<compile_context>
chip_gen: v6e
topology: v6e:2x2x1
jax: 0.10.0
libtpu: 0.0.40
codegen_flags: <defaults>
</compile_context>

<pallas_src>
import functools

import jax
import jax.numpy as jnp
from jax.experimental import pallas as pl
from jax.experimental.pallas import tpu as pltpu


# ----------------------------------------------------------------------------
# Small helpers
# ----------------------------------------------------------------------------
def _round_up(n, m):
    return ((n + m - 1) // m) * m


def _cdiv(a, b):
    return -(-a // b)


def _tpu_vmem_capacity():
    """Physical VMEM bytes per core; conservative fallback if query fails."""
    try:
        cap = getattr(pltpu.get_tpu_info(), "vmem_capacity_bytes", None)
        if cap:
            return int(cap)
    except Exception:
        pass
    return 64 * 1024 * 1024  # v7x per-TC size (most conservative)


def _vpu_supports_bf16():
    """v6e/v7x have bf16 VALUs; v5e/v5p do not (bf16 elementwise would be slower)."""
    try:
        name = str(getattr(pltpu.get_tpu_info(), "chip_version", "")).lower()
        if "5" in name:
            return False
    except Exception:
        pass
    return True


def _choose_batch_tile(batch, block_rows):
    """Pick a batch tile: MXU/lane friendly, and (best effort) an even number
    of grid steps so the parallel batch axis splits evenly across 2 TCs."""
    if batch >= 128:
        tb = min(block_rows, _round_up(batch, 128))
        tb = _round_up(tb, 128)
    else:
        tb = _round_up(max(batch, 1), 8)
    n = _cdiv(batch, tb)
    if n > 1 and n % 2 == 1:
        cand = _round_up(_cdiv(batch, n + 1), 8)
        if cand >= 8 and _cdiv(batch, cand) % 2 == 0:
            tb = cand
    return tb


def _estimate_vmem(tb, in_dim, x_itemsize, ew_bytes):
    """Pessimistic VMEM working-set estimate (counts in-kernel bf16 copies,
    activations, double-buffered weights and Mosaic internal scratch)."""
    x_io = 2 * tb * in_dim * x_itemsize                  # double-buffered x stream
    x_cast = tb * in_dim * 2 if x_itemsize != 2 else 0   # in-kernel bf16 copy of x
    acts = tb * 512 * (4 + ew_bytes) + tb * 256 * (4 + ew_bytes)
    w_bytes = 2 * ((in_dim * 512 + 512 * 256) * 2 + 256 * 4 + (512 + 256) * 4)
    out_io = 2 * tb * 4
    scratch = 2 * 1024 * 1024
    return int(1.25 * (x_io + x_cast + acts + w_bytes + out_io) + scratch)


# ----------------------------------------------------------------------------
# Kernel
# ----------------------------------------------------------------------------
def _wgan_disc_kernel(x_ref, w1_ref, b1_ref, w2_ref, b2_ref, w3_ref, b3_ref,
                      out_ref, *, ew_dtype):
    """One batch tile of the fused 3-layer MLP.

    x_ref  : (TB, in_dim) f32/bf16   streamed per grid step
    w1_ref : (in_dim, 512) bf16      resident across grid steps
    b1_ref : (1, 512)  f32
    w2_ref : (512, 256) bf16
    b2_ref : (1, 256)  f32
    w3_ref : (1, 256)  f32           last layer as a row vector (VPU + XLU path)
    b3_ref : (1,)      f32 in SMEM
    out_ref: (1, 1, TB) f32          lane-dense output slab
    """
    x = x_ref[...]
    if x.dtype != jnp.bfloat16:
        x = x.astype(jnp.bfloat16)

    # Layer 1: Linear(in_dim, 512) + LeakyReLU(0.2). bf16 MXU, f32 accumulate,
    # elementwise in ew_dtype (bf16 on v6e/v7x, f32 on v5e).
    y1 = jnp.dot(x, w1_ref[...], preferred_element_type=jnp.float32)
    y1 = y1.astype(ew_dtype) + b1_ref[...].astype(ew_dtype)
    h1 = jnp.maximum(y1, 0.2 * y1)                       # exact LeakyReLU for 0<slope<1

    # Layer 2: Linear(512, 256) + LeakyReLU(0.2).
    h1_mx = h1 if h1.dtype == jnp.bfloat16 else h1.astype(jnp.bfloat16)
    y2 = jnp.dot(h1_mx, w2_ref[...], preferred_element_type=jnp.float32)
    y2 = y2.astype(ew_dtype) + b2_ref[...].astype(ew_dtype)
    h2 = jnp.maximum(y2, 0.2 * y2)

    # Layer 3: Linear(256, 1). An N=1 matmul would use 1/256 of the MXU output
    # columns and force a 1-lane masked store, so do a VPU multiply + XLU lane
    # reduction (f32) and store the tile as an unmasked lane-dense row.
    out_vec = jnp.sum(h2.astype(jnp.float32) * w3_ref[...], axis=-1) + b3_ref[0]
    out_ref[0, 0, :] = out_vec.astype(out_ref.dtype)


# ----------------------------------------------------------------------------
# Wrapper
# ----------------------------------------------------------------------------
def prepare_params(params):
    """One-time conversion of f32 params into the kernel-resident layout:
    bf16 MXU weights, f32 biases, row-vector last layer, 1-D scalar bias."""
    w1, b1, w2, b2, w3, b3 = params
    return (w1.astype(jnp.bfloat16),
            jnp.reshape(b1, (1, -1)).astype(jnp.float32),
            w2.astype(jnp.bfloat16),
            jnp.reshape(b2, (1, -1)).astype(jnp.float32),
            jnp.reshape(w3, (1, -1)).astype(jnp.float32),
            jnp.reshape(b3, (-1,)).astype(jnp.float32))


def wgan_discriminator_forward(x, prepared_params, *, block_rows=1024,
                               elementwise_dtype=None):
    """Batch-tiled fused forward. Returns shape (B,) like the PyTorch .view(-1).

    NOTE (precision): weights are bf16 on the MXU with f32 accumulation, and
    elementwise math runs in bf16 on chips with a bf16 VPU — not bit-faithful
    to the f32 PyTorch module. Pass elementwise_dtype=jnp.float32 (and f32
    params) if tighter fidelity is required (e.g. gradient-penalty use).
    """
    w1, b1, w2, b2, w3_row, b3 = prepared_params
    B, in_dim = x.shape
    assert w1.shape[0] == in_dim, "param/input in_dim mismatch"

    ew = elementwise_dtype
    if ew is None:
        ew = jnp.bfloat16 if _vpu_supports_bf16() else jnp.float32
    ew_bytes = jnp.dtype(ew).itemsize

    # Per-generation VMEM budget (v5e/v6e ~96 MiB usable, v7x ~48 MiB).
    budget = int(0.75 * _tpu_vmem_capacity())

    tb = _choose_batch_tile(B, block_rows)
    # Shrink the tile until the working set fits the per-core budget
    # (keeps double-buffering of the x stream intact on v7x's 64 MiB).
    while tb > 128 and _estimate_vmem(tb, in_dim, x.dtype.itemsize, ew_bytes) > budget:
        tb = max(128, _round_up(tb // 2, 128))

    padded_b = _round_up(B, tb)
    if padded_b != B:
        x = jnp.pad(x, ((0, padded_b - B), (0, 0)))
    num_tiles = padded_b // tb

    vmem_limit = int(min(budget,
                         max(32 * 1024 * 1024,
                             _estimate_vmem(tb, in_dim, x.dtype.itemsize, ew_bytes))))

    kernel = functools.partial(_wgan_disc_kernel, ew_dtype=ew)

    def run(single_buffer_weights):
        if single_buffer_weights and hasattr(pl, "Buffered"):
            def wspec(shape):
                # Constant index_map -> one resident buffer is enough; don't
                # waste VMEM on the default second pipeline buffer.
                return pl.BlockSpec(shape, lambda i: (0,) * len(shape),
                                    pipeline_mode=pl.Buffered(1))
        else:
            def wspec(shape):
                return pl.BlockSpec(shape, lambda i: (0,) * len(shape))

        return pl.pallas_call(
            kernel,
            out_shape=jax.ShapeDtypeStruct((num_tiles, 1, tb), jnp.float32),
            grid=(num_tiles,),
            in_specs=[
                pl.BlockSpec((tb, in_dim), lambda i: (i, 0)),       # x (streamed)
                wspec(w1.shape),                                     # resident weights
                wspec(b1.shape),
                wspec(w2.shape),
                wspec(b2.shape),
                wspec(w3_row.shape),
                pl.BlockSpec(memory_space=pltpu.MemorySpace.SMEM),   # b3 scalar
            ],
            out_specs=pl.BlockSpec((1, 1, tb), lambda i: (i, 0, 0)),
            compiler_params=pltpu.CompilerParams(
                dimension_semantics=("parallel",),
                vmem_limit_bytes=vmem_limit),
        )(x, w1, b1, w2, b2, w3_row, b3)

    try:
        out = run(True)
    except Exception:
        # Fallback for jax versions where pipeline_mode / Buffered(1) isn't
        # supported by the TPU lowering: default double-buffered weights.
        out = run(False)

    return out.reshape(-1)[:B]    # matches .view(-1)


# ----------------------------------------------------------------------------
# Params & references
# ----------------------------------------------------------------------------
def init_params(key, in_dim):
    """Deterministic parameter init (PyTorch-Linear-style uniform bounds)."""
    ks = jax.random.split(key, 6)

    def linear(kw, kb, fan_in, fan_out):
        bound = 1.0 / jnp.sqrt(jnp.float32(fan_in))
        w = jax.random.uniform(kw, (fan_in, fan_out), jnp.float32, -bound, bound)
        b = jax.random.uniform(kb, (1, fan_out), jnp.float32, -bound, bound)
        return w, b

    w1, b1 = linear(ks[0], ks[1], in_dim, 512)
    w2, b2 = linear(ks[2], ks[3], 512, 256)
    w3, b3 = linear(ks[4], ks[5], 256, 1)
    return (w1, b1, w2, b2, w3, b3)


def reference_forward_f32(x, params):
    """Pure-f32 JAX reference (matches the PyTorch module semantics)."""
    w1, b1, w2, b2, w3, b3 = params
    h = x @ w1 + b1
    h = jnp.where(h > 0, h, 0.2 * h)
    h = h @ w2 + b2
    h = jnp.where(h > 0, h, 0.2 * h)
    return (h @ w3 + b3).reshape(-1)


def reference_forward_mixed(x, params, elementwise_dtype):
    """Reference mirroring the kernel's precision choices exactly:
    bf16 MXU operands, f32 accumulation, elementwise in `elementwise_dtype`,
    f32 final reduction."""
    w1, b1, w2, b2, w3, b3 = params
    bf, ew = jnp.bfloat16, elementwise_dtype
    y = jnp.dot(x.astype(bf), w1.astype(bf), preferred_element_type=jnp.float32)
    y = y.astype(ew) + b1.reshape(1, -1).astype(ew)
    h = jnp.maximum(y, 0.2 * y)
    y = jnp.dot(h.astype(bf), w2.astype(bf), preferred_element_type=jnp.float32)
    y = y.astype(ew) + b2.reshape(1, -1).astype(ew)
    h = jnp.maximum(y, 0.2 * y)
    return jnp.sum(h.astype(jnp.float32) * w3.reshape(1, -1), axis=-1) + b3.reshape(-1)


# ----------------------------------------------------------------------------
# Self-test
# ----------------------------------------------------------------------------
if __name__ == "__main__":
    key = jax.random.PRNGKey(0)
    k_x, k_p, k_x2 = jax.random.split(key, 3)

    in_dim = 32
    params = init_params(k_p, in_dim)
    prepared = prepare_params(params)          # one-time param conversion

    ew_auto = jnp.bfloat16 if _vpu_supports_bf16() else jnp.float32

    # Case 1: small batch, not a multiple of 8 (exercises tail padding),
    # auto-selected elementwise dtype.
    B = 10
    x = jax.random.normal(k_x, (B, in_dim), dtype=jnp.float32)
    out = jax.block_until_ready(wgan_discriminator_forward(x, prepared))
    assert out.shape == (B,)
    assert jnp.allclose(out, reference_forward_mixed(x, params, ew_auto),
                        atol=2e-3, rtol=2e-3), "mismatch vs mixed-precision ref"
    assert jnp.allclose(out, reference_forward_f32(x, params),
                        atol=1e-1, rtol=1e-1), "mismatch vs f32 ref"

    # Case 2: multi-tile batch grid; block_rows=128 triggers the even-tile
    # adjustment (300 rows -> 4 tiles of 80 instead of 3 tiles of 128).
    B2 = 300
    x2 = jax.random.normal(k_x2, (B2, in_dim), dtype=jnp.float32)
    out2 = jax.block_until_ready(
        wgan_discriminator_forward(x2, prepared, block_rows=128))
    assert out2.shape == (B2,)
    assert jnp.allclose(out2, reference_forward_mixed(x2, params, ew_auto),
                        atol=2e-3, rtol=2e-3), "multi-tile mismatch vs ref"

    # Case 3: explicit f32 elementwise path (the v5e configuration).
    out3 = jax.block_until_ready(
        wgan_discriminator_forward(x2, prepared,
                                   elementwise_dtype=jnp.float32))
    assert jnp.allclose(out3, reference_forward_mixed(x2, params, jnp.float32),
                        atol=2e-3, rtol=2e-3), "f32-elementwise path mismatch"

    print("KERNEL_OK")
</pallas_src>

<mosaic_0001>
module attributes {stable_mosaic.version = 11 : i64} {
  func.func @_wgan_disc_kernel(%arg0: i32, %arg1: memref<16x32xf32, #tpu.memory_space<vmem>>, %arg2: memref<32x512xbf16, #tpu.memory_space<vmem>>, %arg3: memref<1x512xf32, #tpu.memory_space<vmem>>, %arg4: memref<512x256xbf16, #tpu.memory_space<vmem>>, %arg5: memref<1x256xf32, #tpu.memory_space<vmem>>, %arg6: memref<1x256xf32, #tpu.memory_space<vmem>>, %arg7: memref<1xf32, #tpu.memory_space<smem>>, %arg8: memref<1x1x16xf32, #tpu.memory_space<vmem>>) attributes {dimension_semantics = [#tpu.dimension_semantics<parallel>], iteration_bounds = array<i64: 1>, scalar_prefetch = 0 : i64, scratch_operands = 0 : i64, tpu.core_type = #tpu.core_type<tc>, window_params = [{transform_indices = @transform_0, window_bounds = array<i64: 16, 32>}, {pipeline_mode = #tpu.pipeline_mode<synchronous>, transform_indices = @transform_1, window_bounds = array<i64: 32, 512>}, {pipeline_mode = #tpu.pipeline_mode<synchronous>, transform_indices = @transform_2, window_bounds = array<i64: 1, 512>}, {pipeline_mode = #tpu.pipeline_mode<synchronous>, transform_indices = @transform_3, window_bounds = array<i64: 512, 256>}, {pipeline_mode = #tpu.pipeline_mode<synchronous>, transform_indices = @transform_4, window_bounds = array<i64: 1, 256>}, {pipeline_mode = #tpu.pipeline_mode<synchronous>, transform_indices = @transform_5, window_bounds = array<i64: 1, 256>}, {transform_indices = @transform_6, window_bounds = array<i64: 1>}, {transform_indices = @transform_7, window_bounds = array<i64: 1, 1, 16>}]} {
    %c0 = arith.constant 0 : index
    %c0_0 = arith.constant 0 : index
    %0 = vector.load %arg1[%c0, %c0_0] : memref<16x32xf32, #tpu.memory_space<vmem>>, vector<16x32xf32>
    %1 = arith.truncf %0 : vector<16x32xf32> to vector<16x32xbf16>
    %c0_1 = arith.constant 0 : index
    %c0_2 = arith.constant 0 : index
    %2 = vector.load %arg2[%c0_1, %c0_2] : memref<32x512xbf16, #tpu.memory_space<vmem>>, vector<32x512xbf16>
    %cst = arith.constant dense<0.000000e+00> : vector<16x512xf32>
    %3 = tpu.matmul %1, %2, %cst {dimension_numbers = #tpu.dot_dimension_numbers<[1], [0], [0], [1], [0, 0, 1, 1], [], []>} : vector<16x32xbf16>, vector<32x512xbf16>, vector<16x512xf32> -> vector<16x512xf32>
    %4 = arith.truncf %3 : vector<16x512xf32> to vector<16x512xbf16>
    %c0_3 = arith.constant 0 : index
    %c0_4 = arith.constant 0 : index
    %5 = vector.load %arg3[%c0_3, %c0_4] : memref<1x512xf32, #tpu.memory_space<vmem>>, vector<1x512xf32>
    %6 = arith.truncf %5 : vector<1x512xf32> to vector<1x512xbf16>
    %7 = vector.broadcast %6 : vector<1x512xbf16> to vector<16x512xbf16>
    %8 = arith.addf %4, %7 : vector<16x512xbf16>
    %cst_5 = arith.constant 2.001950e-01 : bf16
    %9 = vector.broadcast %cst_5 : bf16 to vector<16x512xbf16>
    %10 = arith.mulf %9, %8 : vector<16x512xbf16>
    %11 = arith.maximumf %8, %10 : vector<16x512xbf16>
    %c0_6 = arith.constant 0 : index
    %c0_7 = arith.constant 0 : index
    %12 = vector.load %arg4[%c0_6, %c0_7] : memref<512x256xbf16, #tpu.memory_space<vmem>>, vector<512x256xbf16>
    %cst_8 = arith.constant dense<0.000000e+00> : vector<16x256xf32>
    %13 = tpu.matmul %11, %12, %cst_8 {dimension_numbers = #tpu.dot_dimension_numbers<[1], [0], [0], [1], [0, 0, 1, 1], [], []>} : vector<16x512xbf16>, vector<512x256xbf16>, vector<16x256xf32> -> vector<16x256xf32>
    %14 = arith.truncf %13 : vector<16x256xf32> to vector<16x256xbf16>
    %c0_9 = arith.constant 0 : index
    %c0_10 = arith.constant 0 : index
    %15 = vector.load %arg5[%c0_9, %c0_10] : memref<1x256xf32, #tpu.memory_space<vmem>>, vector<1x256xf32>
    %16 = arith.truncf %15 : vector<1x256xf32> to vector<1x256xbf16>
    %17 = vector.broadcast %16 : vector<1x256xbf16> to vector<16x256xbf16>
    %18 = arith.addf %14, %17 : vector<16x256xbf16>
    %cst_11 = arith.constant 2.001950e-01 : bf16
    %19 = vector.broadcast %cst_11 : bf16 to vector<16x256xbf16>
    %20 = arith.mulf %19, %18 : vector<16x256xbf16>
    %21 = arith.maximumf %18, %20 : vector<16x256xbf16>
    %22 = arith.extf %21 : vector<16x256xbf16> to vector<16x256xf32>
    %c0_12 = arith.constant 0 : index
    %c0_13 = arith.constant 0 : index
    %23 = vector.load %arg6[%c0_12, %c0_13] : memref<1x256xf32, #tpu.memory_space<vmem>>, vector<1x256xf32>
    %24 = vector.broadcast %23 : vector<1x256xf32> to vector<16x256xf32>
    %25 = arith.mulf %22, %24 : vector<16x256xf32>
    %cst_14 = arith.constant dense<0.000000e+00> : vector<16xf32>
    %26 = vector.multi_reduction <add>, %25, %cst_14 [1] : vector<16x256xf32> to vector<16xf32>
    %c0_15 = arith.constant 0 : index
    %27 = memref.load %arg7[%c0_15] : memref<1xf32, #tpu.memory_space<smem>>
    %28 = vector.broadcast %27 : f32 to vector<16xf32>
    %29 = arith.addf %26, %28 : vector<16xf32>
    %c0_16 = arith.constant 0 : index
    %c0_17 = arith.constant 0 : index
    %c0_18 = arith.constant 0 : index
    %30 = vector.load %arg8[%c0_16, %c0_17, %c0_18] : memref<1x1x16xf32, #tpu.memory_space<vmem>>, vector<1x1x16xf32>
    %31 = vector.shape_cast %30 : vector<1x1x16xf32> to vector<16xf32>
    %32 = vector.shape_cast %29 : vector<16xf32> to vector<1x1x16xf32>
    tpu.vector_store %arg8[%c0_16, %c0_17, %c0_18], %32 {strides = array<i32>} : memref<1x1x16xf32, #tpu.memory_space<vmem>>, vector<1x1x16xf32>,
    return
  }
  func.func @transform_0(%arg0: i32) -> (i32, i32) {
    %c0_i32 = arith.constant 0 : i32
    %c0_i32_0 = arith.constant 0 : i32
    return %arg0, %c0_i32 : i32, i32
  }
  func.func @transform_1(%arg0: i32) -> (i32, i32) {
    %c0_i32 = arith.constant 0 : i32
    %c0_i32_0 = arith.constant 0 : i32
    %c0_i32_1 = arith.constant 0 : i32
    return %c0_i32, %c0_i32_0 : i32, i32
  }
  func.func @transform_2(%arg0: i32) -> (i32, i32) {
    %c0_i32 = arith.constant 0 : i32
    %c0_i32_0 = arith.constant 0 : i32
    %c0_i32_1 = arith.constant 0 : i32
    return %c0_i32, %c0_i32_0 : i32, i32
  }
  func.func @transform_3(%arg0: i32) -> (i32, i32) {
    %c0_i32 = arith.constant 0 : i32
    %c0_i32_0 = arith.constant 0 : i32
    %c0_i32_1 = arith.constant 0 : i32
    return %c0_i32, %c0_i32_0 : i32, i32
  }
  func.func @transform_4(%arg0: i32) -> (i32, i32) {
    %c0_i32 = arith.constant 0 : i32
    %c0_i32_0 = arith.constant 0 : i32
    %c0_i32_1 = arith.constant 0 : i32
    return %c0_i32, %c0_i32_0 : i32, i32
  }
  func.func @transform_5(%arg0: i32) -> (i32, i32) {
    %c0_i32 = arith.constant 0 : i32
    %c0_i32_0 = arith.constant 0 : i32
    %c0_i32_1 = arith.constant 0 : i32
    return %c0_i32, %c0_i32_0 : i32, i32
  }
  func.func @transform_6(%arg0: i32) -> i32 {
    %c0_i32 = arith.constant 0 : i32
    %c0_i32_0 = arith.constant 0 : i32
    return %c0_i32 : i32
  }
  func.func @transform_7(%arg0: i32) -> (i32, i32, i32) {
    %c0_i32 = arith.constant 0 : i32
    %c0_i32_0 = arith.constant 0 : i32
    %c0_i32_1 = arith.constant 0 : i32
    return %arg0, %c0_i32, %c0_i32_0 : i32, i32, i32
  }
}

module attributes {stable_mosaic.version = 11 : i64} {
  func.func @_wgan_disc_kernel(%arg0: i32, %arg1: memref<16x32xf32, #tpu.memory_space<vmem>>, %arg2: memref<32x512xbf16, #tpu.memory_space<vmem>>, %arg3: memref<1x512xf32, #tpu.memory_space<vmem>>, %arg4: memref<512x256xbf16, #tpu.memory_space<vmem>>, %arg5: memref<1x256xf32, #tpu.memory_space<vmem>>, %arg6: memref<1x256xf32, #tpu.memory_space<vmem>>, %arg7: memref<1xf32, #tpu.memory_space<smem>>, %arg8: memref<1x1x16xf32, #tpu.memory_space<vmem>>) attributes {dimension_semantics = [#tpu.dimension_semantics<parallel>], iteration_bounds = array<i64: 1>, scalar_prefetch = 0 : i64, scratch_operands = 0 : i64, tpu.core_type = #tpu.core_type<tc>, window_params = [{transform_indices = @transform_0, window_bounds = array<i64: 16, 32>}, {pipeline_mode = #tpu.pipeline_mode<synchronous>, transform_indices = @transform_1, window_bounds = array<i64: 32, 512>}, {pipeline_mode = #tpu.pipeline_mode<synchronous>, transform_indices = @transform_2, window_bounds = array<i64: 1, 512>}, {pipeline_mode = #tpu.pipeline_mode<synchronous>, transform_indices = @transform_3, window_bounds = array<i64: 512, 256>}, {pipeline_mode = #tpu.pipeline_mode<synchronous>, transform_indices = @transform_4, window_bounds = array<i64: 1, 256>}, {pipeline_mode = #tpu.pipeline_mode<synchronous>, transform_indices = @transform_5, window_bounds = array<i64: 1, 256>}, {transform_indices = @transform_6, window_bounds = array<i64: 1>}, {transform_indices = @transform_7, window_bounds = array<i64: 1, 1, 16>}]} {
    %c0 = arith.constant 0 : index
    %c0_0 = arith.constant 0 : index
    %0 = vector.load %arg1[%c0, %c0_0] : memref<16x32xf32, #tpu.memory_space<vmem>>, vector<16x32xf32>
    %1 = arith.truncf %0 : vector<16x32xf32> to vector<16x32xbf16>
    %c0_1 = arith.constant 0 : index
    %c0_2 = arith.constant 0 : index
    %2 = vector.load %arg2[%c0_1, %c0_2] : memref<32x512xbf16, #tpu.memory_space<vmem>>, vector<32x512xbf16>
    %cst = arith.constant dense<0.000000e+00> : vector<16x512xf32>
    %3 = tpu.matmul %1, %2, %cst {dimension_numbers = #tpu.dot_dimension_numbers<[1], [0], [0], [1], [0, 0, 1, 1], [], []>} : vector<16x32xbf16>, vector<32x512xbf16>, vector<16x512xf32> -> vector<16x512xf32>
    %4 = arith.truncf %3 : vector<16x512xf32> to vector<16x512xbf16>
    %c0_3 = arith.constant 0 : index
    %c0_4 = arith.constant 0 : index
    %5 = vector.load %arg3[%c0_3, %c0_4] : memref<1x512xf32, #tpu.memory_space<vmem>>, vector<1x512xf32>
    %6 = arith.truncf %5 : vector<1x512xf32> to vector<1x512xbf16>
    %7 = vector.broadcast %6 : vector<1x512xbf16> to vector<16x512xbf16>
    %8 = arith.addf %4, %7 : vector<16x512xbf16>
    %cst_5 = arith.constant 2.001950e-01 : bf16
    %9 = vector.broadcast %cst_5 : bf16 to vector<16x512xbf16>
    %10 = arith.mulf %9, %8 : vector<16x512xbf16>
    %11 = arith.maximumf %8, %10 : vector<16x512xbf16>
    %c0_6 = arith.constant 0 : index
    %c0_7 = arith.constant 0 : index
    %12 = vector.load %arg4[%c0_6, %c0_7] : memref<512x256xbf16, #tpu.memory_space<vmem>>, vector<512x256xbf16>
    %cst_8 = arith.constant dense<0.000000e+00> : vector<16x256xf32>
    %13 = tpu.matmul %11, %12, %cst_8 {dimension_numbers = #tpu.dot_dimension_numbers<[1], [0], [0], [1], [0, 0, 1, 1], [], []>} : vector<16x512xbf16>, vector<512x256xbf16>, vector<16x256xf32> -> vector<16x256xf32>
    %14 = arith.truncf %13 : vector<16x256xf32> to vector<16x256xbf16>
    %c0_9 = arith.constant 0 : index
    %c0_10 = arith.constant 0 : index
    %15 = vector.load %arg5[%c0_9, %c0_10] : memref<1x256xf32, #tpu.memory_space<vmem>>, vector<1x256xf32>
    %16 = arith.truncf %15 : vector<1x256xf32> to vector<1x256xbf16>
    %17 = vector.broadcast %16 : vector<1x256xbf16> to vector<16x256xbf16>
    %18 = arith.addf %14, %17 : vector<16x256xbf16>
    %cst_11 = arith.constant 2.001950e-01 : bf16
    %19 = vector.broadcast %cst_11 : bf16 to vector<16x256xbf16>
    %20 = arith.mulf %19, %18 : vector<16x256xbf16>
    %21 = arith.maximumf %18, %20 : vector<16x256xbf16>
    %22 = arith.extf %21 : vector<16x256xbf16> to vector<16x256xf32>
    %c0_12 = arith.constant 0 : index
    %c0_13 = arith.constant 0 : index
    %23 = vector.load %arg6[%c0_12, %c0_13] : memref<1x256xf32, #tpu.memory_space<vmem>>, vector<1x256xf32>
    %24 = vector.broadcast %23 : vector<1x256xf32> to vector<16x256xf32>
    %25 = arith.mulf %22, %24 : vector<16x256xf32>
    %cst_14 = arith.constant dense<0.000000e+00> : vector<16xf32>
    %26 = vector.multi_reduction <add>, %25, %cst_14 [1] : vector<16x256xf32> to vector<16xf32>
    %c0_15 = arith.constant 0 : index
    %27 = memref.load %arg7[%c0_15] : memref<1xf32, #tpu.memory_space<smem>>
    %28 = vector.broadcast %27 : f32 to vector<16xf32>
    %29 = arith.addf %26, %28 : vector<16xf32>
    %c0_16 = arith.constant 0 : index
    %c0_17 = arith.constant 0 : index
    %c0_18 = arith.constant 0 : index
    %30 = vector.load %arg8[%c0_16, %c0_17, %c0_18] : memref<1x1x16xf32, #tpu.memory_space<vmem>>, vector<1x1x16xf32>
    %31 = vector.shape_cast %30 : vector<1x1x16xf32> to vector<16xf32>
    %32 = vector.shape_cast %29 : vector<16xf32> to vector<1x1x16xf32>
    tpu.vector_store %arg8[%c0_16, %c0_17, %c0_18], %32 {strides = array<i32>} : memref<1x1x16xf32, #tpu.memory_space<vmem>>, vector<1x1x16xf32>,
    return
  }
  func.func @transform_0(%arg0: i32) -> (i32, i32) {
    %c0_i32 = arith.constant 0 : i32
    %c0_i32_0 = arith.constant 0 : i32
    return %arg0, %c0_i32 : i32, i32
  }
  func.func @transform_1(%arg0: i32) -> (i32, i32) {
    %c0_i32 = arith.constant 0 : i32
    %c0_i32_0 = arith.constant 0 : i32
    %c0_i32_1 = arith.constant 0 : i32
    return %c0_i32, %c0_i32_0 : i32, i32
  }
  func.func @transform_2(%arg0: i32) -> (i32, i32) {
    %c0_i32 = arith.constant 0 : i32
    %c0_i32_0 = arith.constant 0 : i32
    %c0_i32_1 = arith.constant 0 : i32
    return %c0_i32, %c0_i32_0 : i32, i32
  }
  func.func @transform_3(%arg0: i32) -> (i32, i32) {
    %c0_i32 = arith.constant 0 : i32
    %c0_i32_0 = arith.constant 0 : i32
    %c0_i32_1 = arith.constant 0 : i32
    return %c0_i32, %c0_i32_0 : i32, i32
  }
  func.func @transform_4(%arg0: i32) -> (i32, i32) {
    %c0_i32 = arith.constant 0 : i32
    %c0_i32_0 = arith.constant 0 : i32
    %c0_i32_1 = arith.constant 0 : i32
    return %c0_i32, %c0_i32_0 : i32, i32
  }
  func.func @transform_5(%arg0: i32) -> (i32, i32) {
    %c0_i32 = arith.constant 0 : i32
    %c0_i32_0 = arith.constant 0 : i32
    %c0_i32_1 = arith.constant 0 : i32
    return %c0_i32, %c0_i32_0 : i32, i32
  }
  func.func @transform_6(%arg0: i32) -> i32 {
    %c0_i32 = arith.constant 0 : i32
    %c0_i32_0 = arith.constant 0 : i32
    return %c0_i32 : i32
  }
  func.func @transform_7(%arg0: i32) -> (i32, i32, i32) {
    %c0_i32 = arith.constant 0 : i32
    %c0_i32_0 = arith.constant 0 : i32
    %c0_i32_1 = arith.constant 0 : i32
    return %arg0, %c0_i32, %c0_i32_0 : i32, i32, i32
  }
}

</mosaic_0001>

<llo_original>
// kernel: tpu_custom_call.1
$region0: #{tpu_custom_call.1}
  #allocation0 [shape = 'u32[]', space=smem, size = 0x4, offset = 0x4, fixed_abs, tag = 'smem constant byte address 0x4 - core index']
  #allocation1 [shape = 'u32[144,128]{1,0:T(1,128)}', space=vmem, size = 0x12000, scoped, tag = 'internal scratch']
  #allocation2 [shape = 'f32[1]{0:T(128)S(6)}', space=smem, size = 0x200, scoped, tag = 'scoped memory for tpu_custom_call.1']
  %s0 = inlined_call_operand.hbm [shape: f32[16,32], index: 0, kind: input, shape index: {}]
  %s1 = inlined_call_operand.hbm [shape: bf16[32,512], index: 1, kind: input, shape index: {}]
  %s2 = inlined_call_operand.vmem [shape: f32[1,512], index: 2, kind: input, shape index: {}]
  %s3 = inlined_call_operand.hbm [shape: bf16[512,256], index: 3, kind: input, shape index: {}]
  %s4 = inlined_call_operand.vmem [shape: f32[1,256], index: 4, kind: input, shape index: {}]
  %s5 = inlined_call_operand.vmem [shape: f32[1,256], index: 5, kind: input, shape index: {}]
  %s6 = inlined_call_operand.<no memory space> [shape: f32[1], index: 6, kind: input, shape index: {}]
  %s7 = inlined_call_operand.hbm [shape: f32[1,1,16], index: 7, kind: output, shape index: {}]
  %s8 = sld [smem:[#allocation0]]
  $region50: #{tpu_custom_call.1} parent=0
    _
  %s10 = ssub.s32 1, %s8
  %s11 = scalar_select 0, %s10, %s8
  %12 = sst [smem:[#allocation2]] %s6
  $region1: #{tpu_custom_call.1} parent=0
    #allocation3 [shape = 'u8[8192]{0}', space=vmem, size = 0x2000, scoped, tag = 'input window, operand 0, single buffered']
    #allocation4 [shape = 's32[1]{0}', space=sflag, size = 0x4, scoped, tag = 'scoped memory for tpu_custom_call.1']
    #allocation5 [shape = 's32[1]{0}', space=sflag, size = 0x4, scoped, tag = 'scoped memory for tpu_custom_call.1']
    #allocation6 [shape = 'u8[32768]{0}', space=vmem, size = 0x8000, scoped, tag = 'input window, operand 1, single buffered']
    #allocation7 [shape = 's32[1]{0}', space=sflag, size = 0x4, scoped, tag = 'scoped memory for tpu_custom_call.1']
    #allocation8 [shape = 'u8[262144]{0}', space=vmem, size = 0x40000, scoped, tag = 'input window, operand 3, single buffered']
    #allocation9 [shape = 'u8[512]{0}', space=vmem, size = 0x400, scoped, tag = 'output window, operand 0, single buffered']
    %13 = vsyncpa [#allocation4], 0
    %14 = vsyncpa [#allocation7], 0
    %15 = vsyncpa [#allocation5], 0
    // Predicated region
    $region2: #{tpu_custom_call.1} parent=1 // pred_check
      _
    $region3: #{tpu_custom_call.1} parent=1 // pred_check_branch
      %17 = sbr.rel (0) target = $region5
    $region4: #{tpu_custom_call.1} parent=1 // pred_region
      %s19 = ssub.s32 256, 256
      %20 = vsyncadd [#allocation4], %s19
      %s21 = sshll.u32 [#allocation3], 4
      %s22 = int_to_ptr.vmem [resolvable:$true] %s21
      %27 = dma.hbm_to_vmem [thread:$0]  %s0, 256, %s22, [#allocation4], 128, 128, 8
    $region5: #{tpu_custom_call.1} parent=1 // pred_fallthru
      _
    // Predicated region
    $region6: #{tpu_custom_call.1} parent=1 // pred_check
      _
    $region7: #{tpu_custom_call.1} parent=1 // pred_check_branch
      %29 = sbr.rel (0) target = $region9
    $region8: #{tpu_custom_call.1} parent=1 // pred_region
      %s31 = ssub.s32 1024, 1024
      %32 = vsyncadd [#allocation7], %s31
      %s33 = sshll.u32 [#allocation6], 4
      %s34 = int_to_ptr.vmem [resolvable:$true] %s33
      %39 = dma.hbm_to_vmem [thread:$0]  %s1, 1024, %s34, [#allocation7], 256, 256, 16
    $region9: #{tpu_custom_call.1} parent=1 // pred_fallthru
      _
    // Predicated region
    $region10: #{tpu_custom_call.1} parent=1 // pred_check
      _
    $region11: #{tpu_custom_call.1} parent=1 // pred_check_branch
      %41 = sbr.rel (0) target = $region13
    $region12: #{tpu_custom_call.1} parent=1 // pred_region
      _
    $region13: #{tpu_custom_call.1} parent=1 // pred_fallthru
      _
    // Predicated region
    $region14: #{tpu_custom_call.1} parent=1 // pred_check
      _
    $region15: #{tpu_custom_call.1} parent=1 // pred_check_branch
      %43 = sbr.rel (0) target = $region17
    $region16: #{tpu_custom_call.1} parent=1 // pred_region
      %s45 = ssub.s32 8192, 8192
      %46 = vsyncadd [#allocation7], %s45
      %s47 = sshll.u32 [#allocation8], 4
      %s48 = int_to_ptr.vmem [resolvable:$true] %s47
      %53 = dma.hbm_to_vmem [thread:$0]  %s3, 8192, %s48, [#allocation7], 128, 128, 8
    $region17: #{tpu_custom_call.1} parent=1 // pred_fallthru
      _
    // Predicated region
    $region18: #{tpu_custom_call.1} parent=1 // pred_check
      _
    $region19: #{tpu_custom_call.1} parent=1 // pred_check_branch
      %55 = sbr.rel (0) target = $region21
    $region20: #{tpu_custom_call.1} parent=1 // pred_region
      _
    $region21: #{tpu_custom_call.1} parent=1 // pred_fallthru
      _
    // Predicated region
    $region22: #{tpu_custom_call.1} parent=1 // pred_check
      _
    $region23: #{tpu_custom_call.1} parent=1 // pred_check_branch
      %57 = sbr.rel (0) target = $region25
    $region24: #{tpu_custom_call.1} parent=1 // pred_region
      _
    $region25: #{tpu_custom_call.1} parent=1 // pred_fallthru
      _
    // Predicated region
    $region26: #{tpu_custom_call.1} parent=1 // pred_check
      _
    $region27: #{tpu_custom_call.1} parent=1 // pred_check_branch
      %59 = sbr.rel (0) target = $region29
    $region28: #{tpu_custom_call.1} parent=1 // pred_region
      _
    $region29: #{tpu_custom_call.1} parent=1 // pred_fallthru
      _
    // Predicated region
    $region30: #{tpu_custom_call.1} parent=1 // pred_check
      _
    $region31: #{tpu_custom_call.1} parent=1 // pred_check_branch
      %61 = sbr.rel (0) target = $region33
    $region32: #{tpu_custom_call.1} parent=1 // pred_region
      %62 = dma.done [#allocation4], 256
    $region33: #{tpu_custom_call.1} parent=1 // pred_fallthru
      _
    // Predicated region
    $region34: #{tpu_custom_call.1} parent=1 // pred_check
      _
    $region35: #{tpu_custom_call.1} parent=1 // pred_check_branch
      %64 = sbr.rel (0) target = $region37
    $region36: #{tpu_custom_call.1} parent=1 // pred_region
      %65 = dma.done [#allocation7], 1024
    $region37: #{tpu_custom_call.1} parent=1 // pred_fallthru
      _
    // Predicated region
    $region38: #{tpu_custom_call.1} parent=1 // pred_check
      _
    $region39: #{tpu_custom_call.1} parent=1 // pred_check_branch
      %67 = sbr.rel (0) target = $region41
    $region40: #{tpu_custom_call.1} parent=1 // pred_region
      %68 = dma.done [#allocation7], 8192
    $region41: #{tpu_custom_call.1} parent=1 // pred_fallthru
      _
    %v71 = vld [vmem:[#allocation3] sm:$0xff]
    %v72 = vld [vmem:[#allocation3 + $0x8] sm:$0xff]
    %v73 = vpack.c.bf16 %v72, %v71
    %v74 = vld [vmem:[#allocation6] sm:$0xff]
    %v75 = vld [vmem:[#allocation6 + $0x8] sm:$0xff]
    %v76 = vld [vmem:[#allocation6 + $0x10] sm:$0xff]
    %v77 = vld [vmem:[#allocation6 + $0x18] sm:$0xff]
    %v78 = vld [vmem:[#allocation6 + $0x20] sm:$0xff]
    %v79 = vld [vmem:[#allocation6 + $0x28] sm:$0xff]
    %v80 = vld [vmem:[#allocation6 + $0x30] sm:$0xff]
    %v81 = vld [vmem:[#allocation6 + $0x38] sm:$0xff]
    %v90 = vunpack.c.l.b16 %v74
    %v91 = vunpack.c.h.b16 %v74
    %v92 = vunpack.c.l.b16 %v75
    %v93 = vunpack.c.h.b16 %v75
    %v94 = vunpack.c.l.b16 %v76
    %v95 = vunpack.c.h.b16 %v76
    %v96 = vunpack.c.l.b16 %v77
    %v97 = vunpack.c.h.b16 %v77
    %v98 = vunpack.c.l.b16 %v78
    %v99 = vunpack.c.h.b16 %v78
    %v100 = vunpack.c.l.b16 %v79
    %v101 = vunpack.c.h.b16 %v79
    %v102 = vunpack.c.l.b16 %v80
    %v103 = vunpack.c.h.b16 %v80
    %v104 = vunpack.c.l.b16 %v81
    %v105 = vunpack.c.h.b16 %v81
    %v106 = vpack.c.b16 %v94, %v90
    %v107 = vpack.c.b16 %v95, %v91
    %v108 = vpack.c.b16 %v96, %v92
    %v109 = vpack.c.b16 %v97, %v93
    %v110 = vpack.c.b16 %v102, %v98
    %v111 = vpack.c.b16 %v103, %v99
    %v112 = vpack.c.b16 %v104, %v100
    %v113 = vpack.c.b16 %v105, %v101
    %vm122 = vcmask 261120
    %v124 = vsel %vm122, %v73, 0
    %126 = vmatprep.subr.bf16.mxu0 0
    %127 = vmatpush1.bf16.msra.mxu0 0
    %128 = vmatprep.subr.bf16.mxu0 0
    %129 = vmatpush1.bf16.msra.mxu0 0
    %130 = vmatprep.subr.bf16.mxu0 0
    %131 = vmatpush1.bf16.msra.mxu0 0
    %132 = vmatprep.subr.bf16.mxu0 0
    %133 = vmatpush1.bf16.msra.mxu0 0
    %134 = vmatprep.subr.bf16.mxu0 0
    %135 = vmatpush1.bf16.msra.mxu0 0
    %136 = vmatprep.subr.bf16.mxu0 0
    %137 = vmatpush1.bf16.msra.mxu0 0
    %138 = vmatprep.subr.bf16.mxu0 %v111
    %139 = vmatpush1.bf16.msra.mxu0 %v110
    %140 = vmatprep.subr.bf16.mxu0 %v107
    %141 = vmatpush1.bf16.msra.mxu0 %v106
    %142 = vmatprep.subr.bf16.mxu0 0
    %143 = vmatpush2.bf16.msra.mxu0 0
    %144 = vmatprep.subr.bf16.mxu0 0
    %145 = vmatpush2.bf16.msra.mxu0 0
    %146 = vmatprep.subr.bf16.mxu0 0
    %147 = vmatpush2.bf16.msra.mxu0 0
    %148 = vmatprep.subr.bf16.mxu0 0
    %149 = vmatpush2.bf16.msra.mxu0 0
    %150 = vmatprep.subr.bf16.mxu0 0
    %151 = vmatpush2.bf16.msra.mxu0 0
    %152 = vmatprep.subr.bf16.mxu0 0
    %153 = vmatpush2.bf16.msra.mxu0 0
    %154 = vmatprep.subr.bf16.mxu0 0
    %155 = vmatpush2.bf16.msra.mxu0 0
    %156 = vmatprep.subr.bf16.mxu0 0
    %157 = vmatpush2.bf16.msra.mxu0 0
    %158 = vmatprep.mubr.bf16.mxu0 0
    %159 = vmatmul.mubr.bf16.gmra.mxu0 %v124
    %v160 = vpop.f32.mrf.mxu0
    %v161 = vadd.f32 0.0, %v160
    %v162 = vpop.f32.mrf.mxu0
    %v163 = vadd.f32 0.0, %v162
    %v164 = vpop.f32.mrf.mxu0
    %v165 = vadd.f32 0.0, %v164
    %v166 = vpop.f32.mrf.mxu0
    %v167 = vadd.f32 0.0, %v166
    %168 = vdwg.mxu0
    %169 = vmatprep.subr.bf16.mxu0 0
    %170 = vmatpush1.bf16.msra.mxu0 0
    %171 = vmatprep.subr.bf16.mxu0 0
    %172 = vmatpush1.bf16.msra.mxu0 0
    %173 = vmatprep.subr.bf16.mxu0 0
    %174 = vmatpush1.bf16.msra.mxu0 0
    %175 = vmatprep.subr.bf16.mxu0 0
    %176 = vmatpush1.bf16.msra.mxu0 0
    %177 = vmatprep.subr.bf16.mxu0 0
    %178 = vmatpush1.bf16.msra.mxu0 0
    %179 = vmatprep.subr.bf16.mxu0 0
    %180 = vmatpush1.bf16.msra.mxu0 0
    %181 = vmatprep.subr.bf16.mxu0 %v113
    %182 = vmatpush1.bf16.msra.mxu0 %v112
    %183 = vmatprep.subr.bf16.mxu0 %v109
    %184 = vmatpush1.bf16.msra.mxu0 %v108
    %185 = vmatprep.subr.bf16.mxu0 0
    %186 = vmatpush2.bf16.msra.mxu0 0
    %187 = vmatprep.subr.bf16.mxu0 0
    %188 = vmatpush2.bf16.msra.mxu0 0
    %189 = vmatprep.subr.bf16.mxu0 0
    %190 = vmatpush2.bf16.msra.mxu0 0
    %191 = vmatprep.subr.bf16.mxu0 0
    %192 = vmatpush2.bf16.msra.mxu0 0
    %193 = vmatprep.subr.bf16.mxu0 0
    %194 = vmatpush2.bf16.msra.mxu0 0
    %195 = vmatprep.subr.bf16.mxu0 0
    %196 = vmatpush2.bf16.msra.mxu0 0
    %197 = vmatprep.subr.bf16.mxu0 0
    %198 = vmatpush2.bf16.msra.mxu0 0
    %199 = vmatprep.subr.bf16.mxu0 0
    %200 = vmatpush2.bf16.msra.mxu0 0
    %201 = vmatprep.mubr.bf16.mxu0 0
    %202 = vmatmul.mubr.bf16.gmra.mxu0 %v124
    %v203 = vpop.f32.mrf.mxu0
    %v204 = vadd.f32 0.0, %v203
    %v205 = vpop.f32.mrf.mxu0
    %v206 = vadd.f32 0.0, %v205
    %v207 = vpop.f32.mrf.mxu0
    %v208 = vadd.f32 0.0, %v207
    %v209 = vpop.f32.mrf.mxu0
    %v210 = vadd.f32 0.0, %v209
    %211 = vdwg.mxu0
    %v212 = vpack.c.bf16 %v165, %v161
    %v213 = vpack.c.bf16 %v167, %v163
    %v214 = vpack.c.bf16 %v208, %v204
    %v215 = vpack.c.bf16 %v210, %v206
    %v216 = vld [vmem:[%s2] sm:$0xf]
    %v218 = vlaneseq
    %v219 = vshrl.u32 %v218, 7
    %v220 = vsub.s32 0, %v219
    %v221 = vrot.slane %v216, %v220
    %v222 = vlaneseq
    %v223 = vshrl.u32 %v222, 7
    %v224 = vsub.s32 1, %v223
    %v225 = vrot.slane %v216, %v224
    %v226 = vlaneseq
    %v227 = vshrl.u32 %v226, 7
    %v228 = vsub.s32 2, %v227
    %v229 = vrot.slane %v216, %v228
    %v230 = vlaneseq
    %v231 = vshrl.u32 %v230, 7
    %v232 = vsub.s32 3, %v231
    %v233 = vrot.slane %v216, %v232
    %v238 = vpack.c.bf16 %v221, %v221
    %v239 = vpack.c.bf16 %v225, %v225
    %v240 = vpack.c.bf16 %v229, %v229
    %v241 = vpack.c.bf16 %v233, %v233
    %v243 = vpack.i.b16 %v238, %v238
    %v245 = vlaneseq
    %v246 = vshrl.u32 %v245, 7
    %v247 = vsub.s32 0, %v246
    %v248 = vrot.slane %v243, %v247
    %v250 = vpack.i.b16 %v239, %v239
    %v252 = vlaneseq
    %v253 = vshrl.u32 %v252, 7
    %v254 = vsub.s32 0, %v253
    %v255 = vrot.slane %v250, %v254
    %v257 = vpack.i.b16 %v240, %v240
    %v259 = vlaneseq
    %v260 = vshrl.u32 %v259, 7
    %v261 = vsub.s32 0, %v260
    %v262 = vrot.slane %v257, %v261
    %v264 = vpack.i.b16 %v241, %v241
    %v266 = vlaneseq
    %v267 = vshrl.u32 %v266, 7
    %v268 = vsub.s32 0, %v267
    %v269 = vrot.slane %v264, %v268
    %v270 = vadd.bf16 %v212, %v248
    %v271 = vadd.bf16 %v213, %v255
    %v272 = vadd.bf16 %v214, %v262
    %v273 = vadd.bf16 %v215, %v269
    %v274 = vmul.bf16 %v270, 1045249613
    %v275 = vmul.bf16 %v271, 1045249613
    %v276 = vmul.bf16 %v272, 1045249613
    %v277 = vmul.bf16 %v273, 1045249613
    %v278 = vmax.bf16 %v270, %v274
    %v279 = vmax.bf16 %v271, %v275
    %v280 = vmax.bf16 %v272, %v276
    %v281 = vmax.bf16 %v273, %v277
    %v282 = vld [vmem:[#allocation8] sm:$0xff]
    %v283 = vld [vmem:[#allocation8 + $0x8] sm:$0xff]
    %v284 = vld [vmem:[#allocation8 + $0x10] sm:$0xff]
    %v285 = vld [vmem:[#allocation8 + $0x18] sm:$0xff]
    %v286 = vld [vmem:[#allocation8 + $0x20] sm:$0xff]
    %v287 = vld [vmem:[#allocation8 + $0x28] sm:$0xff]
    %v288 = vld [vmem:[#allocation8 + $0x30] sm:$0xff]
    %v289 = vld [vmem:[#allocation8 + $0x38] sm:$0xff]
    %v290 = vld [vmem:[#allocation8 + $0x40] sm:$0xff]
    %v291 = vld [vmem:[#allocation8 + $0x48] sm:$0xff]
    %v292 = vld [vmem:[#allocation8 + $0x50] sm:$0xff]
    %v293 = vld [vmem:[#allocation8 + $0x58] sm:$0xff]
    %v294 = vld [vmem:[#allocation8 + $0x60] sm:$0xff]
    %v295 = vld [vmem:[#allocation8 + $0x68] sm:$0xff]
    %v296 = vld [vmem:[#allocation8 + $0x70] sm:$0xff]
    %v297 = vld [vmem:[#allocation8 + $0x78] sm:$0xff]
    %v298 = vld [vmem:[#allocation8 + $0x80] sm:$0xff]
    %v299 = vld [vmem:[#allocation8 + $0x88] sm:$0xff]
    %v300 = vld [vmem:[#allocation8 + $0x90] sm:$0xff]
    %v301 = vld [vmem:[#allocation8 + $0x98] sm:$0xff]
    %v302 = vld [vmem:[#allocation8 + $0xa0] sm:$0xff]
    %v303 = vld [vmem:[#allocation8 + $0xa8] sm:$0xff]
    %v304 = vld [vmem:[#allocation8 + $0xb0] sm:$0xff]
    %v305 = vld [vmem:[#allocation8 + $0xb8] sm:$0xff]
    %v306 = vld [vmem:[#allocation8 + $0xc0] sm:$0xff]
    %v307 = vld [vmem:[#allocation8 + $0xc8] sm:$0xff]
    %v308 = vld [vmem:[#allocation8 + $0xd0] sm:$0xff]
    %v309 = vld [vmem:[#allocation8 + $0xd8] sm:$0xff]
    %v310 = vld [vmem:[#allocation8 + $0xe0] sm:$0xff]
    %v311 = vld [vmem:[#allocation8 + $0xe8] sm:$0xff]
    %v312 = vld [vmem:[#allocation8 + $0xf0] sm:$0xff]
    %v313 = vld [vmem:[#allocation8 + $0xf8] sm:$0xff]
    %v314 = vld [vmem:[#allocation8 + $0x100] sm:$0xff]
    %v315 = vld [vmem:[#allocation8 + $0x108] sm:$0xff]
    %v316 = vld [vmem:[#allocation8 + $0x110] sm:$0xff]
    %v317 = vld [vmem:[#allocation8 + $0x118] sm:$0xff]
    %v318 = vld [vmem:[#allocation8 + $0x120] sm:$0xff]
    %v319 = vld [vmem:[#allocation8 + $0x128] sm:$0xff]
    %v320 = vld [vmem:[#allocation8 + $0x130] sm:$0xff]
    %v321 = vld [vmem:[#allocation8 + $0x138] sm:$0xff]
    %v322 = vld [vmem:[#allocation8 + $0x140] sm:$0xff]
    %v323 = vld [vmem:[#allocation8 + $0x148] sm:$0xff]
    %v324 = vld [vmem:[#allocation8 + $0x150] sm:$0xff]
    %v325 = vld [vmem:[#allocation8 + $0x158] sm:$0xff]
    %v326 = vld [vmem:[#allocation8 + $0x160] sm:$0xff]
    %v327 = vld [vmem:[#allocation8 + $0x168] sm:$0xff]
    %v328 = vld [vmem:[#allocation8 + $0x170] sm:$0xff]
    %v329 = vld [vmem:[#allocation8 + $0x178] sm:$0xff]
    %v330 = vld [vmem:[#allocation8 + $0x180] sm:$0xff]
    %v331 = vld [vmem:[#allocation8 + $0x188] sm:$0xff]
    %v332 = vld [vmem:[#allocation8 + $0x190] sm:$0xff]
    %v333 = vld [vmem:[#allocation8 + $0x198] sm:$0xff]
    %v334 = vld [vmem:[#allocation8 + $0x1a0] sm:$0xff]
    %v335 = vld [vmem:[#allocation8 + $0x1a8] sm:$0xff]
    %v336 = vld [vmem:[#allocation8 + $0x1b0] sm:$0xff]
    %v337 = vld [vmem:[#allocation8 + $0x1b8] sm:$0xff]
    %v338 = vld [vmem:[#allocation8 + $0x1c0] sm:$0xff]
    %v339 = vld [vmem:[#allocation8 + $0x1c8] sm:$0xff]
    %v340 = vld [vmem:[#allocation8 + $0x1d0] sm:$0xff]
    %v341 = vld [vmem:[#allocation8 + $0x1d8] sm:$0xff]
    %v342 = vld [vmem:[#allocation8 + $0x1e0] sm:$0xff]
    %v343 = vld [vmem:[#allocation8 + $0x1e8] sm:$0xff]
    %v344 = vld [vmem:[#allocation8 + $0x1f0] sm:$0xff]
    %v345 = vld [vmem:[#allocation8 + $0x1f8] sm:$0xff]
    %v410 = vunpack.c.l.b16 %v282
    %v411 = vunpack.c.h.b16 %v282
    %v412 = vunpack.c.l.b16 %v283
    %v413 = vunpack.c.h.b16 %v283
    %v414 = vunpack.c.l.b16 %v284
    %v415 = vunpack.c.h.b16 %v284
    %v416 = vunpack.c.l.b16 %v285
    %v417 = vunpack.c.h.b16 %v285
    %v418 = vunpack.c.l.b16 %v286
    %v419 = vunpack.c.h.b16 %v286
    %v420 = vunpack.c.l.b16 %v287
    %v421 = vunpack.c.h.b16 %v287
    %v422 = vunpack.c.l.b16 %v288
    %v423 = vunpack.c.h.b16 %v288
    %v424 = vunpack.c.l.b16 %v289
    %v425 = vunpack.c.h.b16 %v289
    %v426 = vunpack.c.l.b16 %v290
    %v427 = vunpack.c.h.b16 %v290
    %v428 = vunpack.c.l.b16 %v291
    %v429 = vunpack.c.h.b16 %v291
    %v430 = vunpack.c.l.b16 %v292
    %v431 = vunpack.c.h.b16 %v292
    %v432 = vunpack.c.l.b16 %v293
    %v433 = vunpack.c.h.b16 %v293
    %v434 = vunpack.c.l.b16 %v294
    %v435 = vunpack.c.h.b16 %v294
    %v436 = vunpack.c.l.b16 %v295
    %v437 = vunpack.c.h.b16 %v295
    %v438 = vunpack.c.l.b16 %v296
    %v439 = vunpack.c.h.b16 %v296
    %v440 = vunpack.c.l.b16 %v297
    %v441 = vunpack.c.h.b16 %v297
    %v442 = vunpack.c.l.b16 %v298
    %v443 = vunpack.c.h.b16 %v298
    %v444 = vunpack.c.l.b16 %v299
    %v445 = vunpack.c.h.b16 %v299
    %v446 = vunpack.c.l.b16 %v300
    %v447 = vunpack.c.h.b16 %v300
    %v448 = vunpack.c.l.b16 %v301
    %v449 = vunpack.c.h.b16 %v301
    %v450 = vunpack.c.l.b16 %v302
    %v451 = vunpack.c.h.b16 %v302
    %v452 = vunpack.c.l.b16 %v303
    %v453 = vunpack.c.h.b16 %v303
    %v454 = vunpack.c.l.b16 %v304
    %v455 = vunpack.c.h.b16 %v304
    %v456 = vunpack.c.l.b16 %v305
    %v457 = vunpack.c.h.b16 %v305
    %v458 = vunpack.c.l.b16 %v306
    %v459 = vunpack.c.h.b16 %v306
    %v460 = vunpack.c.l.b16 %v307
    %v461 = vunpack.c.h.b16 %v307
    %v462 = vunpack.c.l.b16 %v308
    %v463 = vunpack.c.h.b16 %v308
    %v464 = vunpack.c.l.b16 %v309
    %v465 = vunpack.c.h.b16 %v309
    %v466 = vunpack.c.l.b16 %v310
    %v467 = vunpack.c.h.b16 %v310
    %v468 = vunpack.c.l.b16 %v311
    %v469 = vunpack.c.h.b16 %v311
    %v470 = vunpack.c.l.b16 %v312
    %v471 = vunpack.c.h.b16 %v312
    %v472 = vunpack.c.l.b16 %v313
    %v473 = vunpack.c.h.b16 %v313
    %v474 = vunpack.c.l.b16 %v314
    %v475 = vunpack.c.h.b16 %v314
    %v476 = vunpack.c.l.b16 %v315
    %v477 = vunpack.c.h.b16 %v315
    %v478 = vunpack.c.l.b16 %v316
    %v479 = vunpack.c.h.b16 %v316
    %v480 = vunpack.c.l.b16 %v317
    %v481 = vunpack.c.h.b16 %v317
    %v482 = vunpack.c.l.b16 %v318
    %v483 = vunpack.c.h.b16 %v318
    %v484 = vunpack.c.l.b16 %v319
    %v485 = vunpack.c.h.b16 %v319
    %v486 = vunpack.c.l.b16 %v320
    %v487 = vunpack.c.h.b16 %v320
    %v488 = vunpack.c.l.b16 %v321
    %v489 = vunpack.c.h.b16 %v321
    %v490 = vunpack.c.l.b16 %v322
    %v491 = vunpack.c.h.b16 %v322
    %v492 = vunpack.c.l.b16 %v323
    %v493 = vunpack.c.h.b16 %v323
    %v494 = vunpack.c.l.b16 %v324
    %v495 = vunpack.c.h.b16 %v324
    %v496 = vunpack.c.l.b16 %v325
    %v497 = vunpack.c.h.b16 %v325
    %v498 = vunpack.c.l.b16 %v326
    %v499 = vunpack.c.h.b16 %v326
    %v500 = vunpack.c.l.b16 %v327
    %v501 = vunpack.c.h.b16 %v327
    %v502 = vunpack.c.l.b16 %v328
    %v503 = vunpack.c.h.b16 %v328
    %v504 = vunpack.c.l.b16 %v329
    %v505 = vunpack.c.h.b16 %v329
    %v506 = vunpack.c.l.b16 %v330
    %v507 = vunpack.c.h.b16 %v330
    %v508 = vunpack.c.l.b16 %v331
    %v509 = vunpack.c.h.b16 %v331
    %v510 = vunpack.c.l.b16 %v332
    %v511 = vunpack.c.h.b16 %v332
    %v512 = vunpack.c.l.b16 %v333
    %v513 = vunpack.c.h.b16 %v333
    %v514 = vunpack.c.l.b16 %v334
    %v515 = vunpack.c.h.b16 %v334
    %v516 = vunpack.c.l.b16 %v335
    %v517 = vunpack.c.h.b16 %v335
    %v518 = vunpack.c.l.b16 %v336
    %v519 = vunpack.c.h.b16 %v336
    %v520 = vunpack.c.l.b16 %v337
    %v521 = vunpack.c.h.b16 %v337
    %v522 = vunpack.c.l.b16 %v338
    %v523 = vunpack.c.h.b16 %v338
    %v524 = vunpack.c.l.b16 %v339
    %v525 = vunpack.c.h.b16 %v339
    %v526 = vunpack.c.l.b16 %v340
    %v527 = vunpack.c.h.b16 %v340
    %v528 = vunpack.c.l.b16 %v341
    %v529 = vunpack.c.h.b16 %v341
    %v530 = vunpack.c.l.b16 %v342
    %v531 = vunpack.c.h.b16 %v342
    %v532 = vunpack.c.l.b16 %v343
    %v533 = vunpack.c.h.b16 %v343
    %v534 = vunpack.c.l.b16 %v344
    %v535 = vunpack.c.h.b16 %v344
    %v536 = vunpack.c.l.b16 %v345
    %v537 = vunpack.c.h.b16 %v345
    %v538 = vpack.c.b16 %v412, %v410
    %v539 = vpack.c.b16 %v413, %v411
    %v540 = vpack.c.b16 %v416, %v414
    %v541 = vpack.c.b16 %v417, %v415
    %v542 = vpack.c.b16 %v420, %v418
    %v543 = vpack.c.b16 %v421, %v419
    %v544 = vpack.c.b16 %v424, %v422
    %v545 = vpack.c.b16 %v425, %v423
    %v546 = vpack.c.b16 %v428, %v426
    %v547 = vpack.c.b16 %v429, %v427
    %v548 = vpack.c.b16 %v432, %v430
    %v549 = vpack.c.b16 %v433, %v431
    %v550 = vpack.c.b16 %v436, %v434
    %v551 = vpack.c.b16 %v437, %v435
    %v552 = vpack.c.b16 %v440, %v438
    %v553 = vpack.c.b16 %v441, %v439
    %v554 = vpack.c.b16 %v444, %v442
    %v555 = vpack.c.b16 %v445, %v443
    %v556 = vpack.c.b16 %v448, %v446
    %v557 = vpack.c.b16 %v449, %v447
    %v558 = vpack.c.b16 %v452, %v450
    %v559 = vpack.c.b16 %v453, %v451
    %v560 = vpack.c.b16 %v456, %v454
    %v561 = vpack.c.b16 %v457, %v455
    %v562 = vpack.c.b16 %v460, %v458
    %v563 = vpack.c.b16 %v461, %v459
    %v564 = vpack.c.b16 %v464, %v462
    %v565 = vpack.c.b16 %v465, %v463
    %v566 = vpack.c.b16 %v468, %v466
    %v567 = vpack.c.b16 %v469, %v467
    %v568 = vpack.c.b16 %v472, %v470
    %v569 = vpack.c.b16 %v473, %v471
    %v570 = vpack.c.b16 %v476, %v474
    %v571 = vpack.c.b16 %v477, %v475
    %v572 = vpack.c.b16 %v480, %v478
    %v573 = vpack.c.b16 %v481, %v479
    %v574 = vpack.c.b16 %v484, %v482
    %v575 = vpack.c.b16 %v485, %v483
    %v576 = vpack.c.b16 %v488, %v486
    %v577 = vpack.c.b16 %v489, %v487
    %v578 = vpack.c.b16 %v492, %v490
    %v579 = vpack.c.b16 %v493, %v491
    %v580 = vpack.c.b16 %v496, %v494
    %v581 = vpack.c.b16 %v497, %v495
    %v582 = vpack.c.b16 %v500, %v498
    %v583 = vpack.c.b16 %v501, %v499
    %v584 = vpack.c.b16 %v504, %v502
    %v585 = vpack.c.b16 %v505, %v503
    %v586 = vpack.c.b16 %v508, %v506
    %v587 = vpack.c.b16 %v509, %v507
    %v588 = vpack.c.b16 %v512, %v510
    %v589 = vpack.c.b16 %v513, %v511
    %v590 = vpack.c.b16 %v516, %v514
    %v591 = vpack.c.b16 %v517, %v515
    %v592 = vpack.c.b16 %v520, %v518
    %v593 = vpack.c.b16 %v521, %v519
    %v594 = vpack.c.b16 %v524, %v522
    %v595 = vpack.c.b16 %v525, %v523
    %v596 = vpack.c.b16 %v528, %v526
    %v597 = vpack.c.b16 %v529, %v527
    %v598 = vpack.c.b16 %v532, %v530
    %v599 = vpack.c.b16 %v533, %v531
    %v600 = vpack.c.b16 %v536, %v534
    %v601 = vpack.c.b16 %v537, %v535
    %666 = vmatprep.subr.bf16.mxu0 %v553
    %667 = vmatpush1.bf16.msra.mxu0 %v552
    %668 = vmatprep.subr.bf16.mxu0 %v551
    %669 = vmatpush1.bf16.msra.mxu0 %v550
    %670 = vmatprep.subr.bf16.mxu0 %v549
    %671 = vmatpush1.bf16.msra.mxu0 %v548
    %672 = vmatprep.subr.bf16.mxu0 %v547
    %673 = vmatpush1.bf16.msra.mxu0 %v546
    %674 = vmatprep.subr.bf16.mxu0 %v545
    %675 = vmatpush1.bf16.msra.mxu0 %v544
    %676 = vmatprep.subr.bf16.mxu0 %v543
    %677 = vmatpush1.bf16.msra.mxu0 %v542
    %678 = vmatprep.subr.bf16.mxu0 %v541
    %679 = vmatpush1.bf16.msra.mxu0 %v540
    %680 = vmatprep.subr.bf16.mxu0 %v539
    %681 = vmatpush1.bf16.msra.mxu0 %v538
    %682 = vmatprep.subr.bf16.mxu0 %v569
    %683 = vmatpush2.bf16.msra.mxu0 %v568
    %684 = vmatprep.subr.bf16.mxu0 %v567
    %685 = vmatpush2.bf16.msra.mxu0 %v566
    %686 = vmatprep.subr.bf16.mxu0 %v565
    %687 = vmatpush2.bf16.msra.mxu0 %v564
    %688 = vmatprep.subr.bf16.mxu0 %v563
    %689 = vmatpush2.bf16.msra.mxu0 %v562
    %690 = vmatprep.subr.bf16.mxu0 %v561
    %691 = vmatpush2.bf16.msra.mxu0 %v560
    %692 = vmatprep.subr.bf16.mxu0 %v559
    %693 = vmatpush2.bf16.msra.mxu0 %v558
    %694 = vmatprep.subr.bf16.mxu0 %v557
    %695 = vmatpush2.bf16.msra.mxu0 %v556
    %696 = vmatprep.subr.bf16.mxu0 %v555
    %697 = vmatpush2.bf16.msra.mxu0 %v554
    %698 = vmatprep.mubr.bf16.mxu0 %v279
    %699 = vmatmul.mubr.bf16.gmra.mxu0 %v278
    %v700 = vpop.f32.mrf.mxu0
    %v701 = vadd.f32 0.0, %v700
    %v702 = vpop.f32.mrf.mxu0
    %v703 = vadd.f32 0.0, %v702
    %v704 = vpop.f32.mrf.mxu0
    %v705 = vadd.f32 0.0, %v704
    %v706 = vpop.f32.mrf.mxu0
    %v707 = vadd.f32 0.0, %v706
    %708 = vdwg.mxu0
    %709 = vmatprep.subr.bf16.mxu0 %v585
    %710 = vmatpush1.bf16.msra.mxu0 %v584
    %711 = vmatprep.subr.bf16.mxu0 %v583
    %712 = vmatpush1.bf16.msra.mxu0 %v582
    %713 = vmatprep.subr.bf16.mxu0 %v581
    %714 = vmatpush1.bf16.msra.mxu0 %v580
    %715 = vmatprep.subr.bf16.mxu0 %v579
    %716 = vmatpush1.bf16.msra.mxu0 %v578
    %717 = vmatprep.subr.bf16.mxu0 %v577
    %718 = vmatpush1.bf16.msra.mxu0 %v576
    %719 = vmatprep.subr.bf16.mxu0 %v575
    %720 = vmatpush1.bf16.msra.mxu0 %v574
    %721 = vmatprep.subr.bf16.mxu0 %v573
    %722 = vmatpush1.bf16.msra.mxu0 %v572
    %723 = vmatprep.subr.bf16.mxu0 %v571
    %724 = vmatpush1.bf16.msra.mxu0 %v570
    %725 = vmatprep.subr.bf16.mxu0 %v601
    %726 = vmatpush2.bf16.msra.mxu0 %v600
    %727 = vmatprep.subr.bf16.mxu0 %v599
    %728 = vmatpush2.bf16.msra.mxu0 %v598
    %729 = vmatprep.subr.bf16.mxu0 %v597
    %730 = vmatpush2.bf16.msra.mxu0 %v596
    %731 = vmatprep.subr.bf16.mxu0 %v595
    %732 = vmatpush2.bf16.msra.mxu0 %v594
    %733 = vmatprep.subr.bf16.mxu0 %v593
    %734 = vmatpush2.bf16.msra.mxu0 %v592
    %735 = vmatprep.subr.bf16.mxu0 %v591
    %736 = vmatpush2.bf16.msra.mxu0 %v590
    %737 = vmatprep.subr.bf16.mxu0 %v589
    %738 = vmatpush2.bf16.msra.mxu0 %v588
    %739 = vmatprep.subr.bf16.mxu0 %v587
    %740 = vmatpush2.bf16.msra.mxu0 %v586
    %741 = vmatprep.mubr.bf16.mxu0 %v281
    %742 = vmatmul.mubr.bf16.gmra.mxu0 %v280
    %v743 = vpop.f32.mrf.mxu0
    %v744 = vadd.f32 %v701, %v743
    %v745 = vpop.f32.mrf.mxu0
    %v746 = vadd.f32 %v703, %v745
    %v747 = vpop.f32.mrf.mxu0
    %v748 = vadd.f32 %v705, %v747
    %v749 = vpop.f32.mrf.mxu0
    %v750 = vadd.f32 %v707, %v749
    %751 = vdwg.mxu0
    %v752 = vpack.c.bf16 %v748, %v744
    %v753 = vpack.c.bf16 %v750, %v746
    %v754 = vld [vmem:[%s4] sm:$0x3]
    %v756 = vlaneseq
    %v757 = vshrl.u32 %v756, 7
    %v758 = vsub.s32 0, %v757
    %v759 = vrot.slane %v754, %v758
    %v760 = vlaneseq
    %v761 = vshrl.u32 %v760, 7
    %v762 = vsub.s32 1, %v761
    %v763 = vrot.slane %v754, %v762
    %v766 = vpack.c.bf16 %v759, %v759
    %v767 = vpack.c.bf16 %v763, %v763
    %v769 = vpack.i.b16 %v766, %v766
    %v771 = vlaneseq
    %v772 = vshrl.u32 %v771, 7
    %v773 = vsub.s32 0, %v772
    %v774 = vrot.slane %v769, %v773
    %v776 = vpack.i.b16 %v767, %v767
    %v778 = vlaneseq
    %v779 = vshrl.u32 %v778, 7
    %v780 = vsub.s32 0, %v779
    %v781 = vrot.slane %v776, %v780
    %v782 = vadd.bf16 %v752, %v774
    %v783 = vadd.bf16 %v753, %v781
    %v784 = vmul.bf16 %v782, 1045249613
    %v785 = vmul.bf16 %v783, 1045249613
    %v786 = vmax.bf16 %v782, %v784
    %v787 = vmax.bf16 %v783, %v785
    %v788 = vunpack.c.l.bf16 %v786
    %v789 = vunpack.c.l.bf16 %v787
    %v790 = vunpack.c.h.bf16 %v786
    %v791 = vunpack.c.h.bf16 %v787
    %v792 = vld [vmem:[%s5] sm:$0x3]
    %v794 = vlaneseq
    %v795 = vshrl.u32 %v794, 7
    %v796 = vsub.s32 0, %v795
    %v797 = vrot.slane %v792, %v796
    %v798 = vlaneseq
    %v799 = vshrl.u32 %v798, 7
    %v800 = vsub.s32 1, %v799
    %v801 = vrot.slane %v792, %v800
    %v804 = vmul.f32 %v788, %v797
    %v805 = vmul.f32 %v789, %v801
    %v806 = vmul.f32 %v790, %v797
    %v807 = vmul.f32 %v791, %v801
    %v808 = vadd.f32 %v804, %v805
    %809 = vadd.xlane.f32.xlu0 %v808
    %v810 = vpop.xlane.xlu0 %809
    %v811 = vadd.f32 %v806, %v807
    %812 = vadd.xlane.f32.xlu0 %v811
    %v813 = vpop.xlane.xlu0 %812
    %s814 = sld [smem:[#allocation2]]
    %v815 = vstv %s814
    %v816 = vadd.f32 %v810, %v815
    %v817 = vadd.f32 %v813, %v815
    %v820 = vlaneseq
    %v821 = vand.u32 %v820, 127
    %v822 = vlaneseq
    %v823 = vshrl.u32 %v822, 7
    %v824 = vsub.s32 %v821, %v823
    %v825 = vrot.slane %v816, %v824
    %v826 = vadd.s32 %v821, 4294967288
    %v827 = vlaneseq
    %v828 = vshrl.u32 %v827, 7
    %v829 = vsub.s32 %v826, %v828
    %v830 = vrot.slane %v817, %v829
    %vm831 = vcmask 130112
    %v832 = vsel %vm831, %v830, %v825
    %vm834 = vcmask 122880
    %835 = vst.msk [vmem:[#allocation9] sm:$0x1] %vm834, %v832
    // Predicated region
    $region42: #{tpu_custom_call.1} parent=1 // pred_check
      _
    $region43: #{tpu_custom_call.1} parent=1 // pred_check_branch
      %837 = sbr.rel (0) target = $region45
    $region44: #{tpu_custom_call.1} parent=1 // pred_region
      %s839 = ssub.s32 16, 16
      %840 = vsyncadd [#allocation5], %s839
      %s842 = sshll.u32 [#allocation9], 4
      %s843 = int_to_ptr.vmem [resolvable:$true] %s842
      %845 = dma.vmem_to_hbm [thread:$0]  %s843, 16, %s7, [#allocation5]
    $region45: #{tpu_custom_call.1} parent=1 // pred_fallthru
      _
    // Predicated region
    $region46: #{tpu_custom_call.1} parent=1 // pred_check
      _
    $region47: #{tpu_custom_call.1} parent=1 // pred_check_branch
      %847 = sbr.rel (0) target = $region49
    $region48: #{tpu_custom_call.1} parent=1 // pred_region
      %848 = dma.done [#allocation5], 16
    $region49: #{tpu_custom_call.1} parent=1 // pred_fallthru
      _
    %849 = vsyncpa [#allocation4], 1
    %850 = vsyncpa [#allocation7], 1
    %851 = vsyncpa [#allocation5], 1

// kernel: tpu_custom_call.1
$region0: #{tpu_custom_call.1}
  #allocation0 [shape = 'u32[]', space=smem, size = 0x4, offset = 0x4, fixed_abs, tag = 'smem constant byte address 0x4 - core index']
  #allocation1 [shape = 'u32[144,128]{1,0:T(1,128)}', space=vmem, size = 0x12000, scoped, tag = 'internal scratch']
  #allocation2 [shape = 'f32[1]{0:T(128)S(6)}', space=smem, size = 0x200, scoped, tag = 'scoped memory for tpu_custom_call.1']
  %s0 = inlined_call_operand.hbm [shape: f32[16,32], index: 0, kind: input, shape index: {}]
  %s1 = inlined_call_operand.hbm [shape: bf16[32,512], index: 1, kind: input, shape index: {}]
  %s2 = inlined_call_operand.vmem [shape: f32[1,512], index: 2, kind: input, shape index: {}]
  %s3 = inlined_call_operand.hbm [shape: bf16[512,256], index: 3, kind: input, shape index: {}]
  %s4 = inlined_call_operand.vmem [shape: f32[1,256], index: 4, kind: input, shape index: {}]
  %s5 = inlined_call_operand.vmem [shape: f32[1,256], index: 5, kind: input, shape index: {}]
  %s6 = inlined_call_operand.<no memory space> [shape: f32[1], index: 6, kind: input, shape index: {}]
  %s7 = inlined_call_operand.hbm [shape: f32[1,1,16], index: 7, kind: output, shape index: {}]
  %s8 = sld [smem:[#allocation0]]
  $region50: #{tpu_custom_call.1} parent=0
    _
  %s10 = ssub.s32 1, %s8
  %s11 = scalar_select 0, %s10, %s8
  %12 = sst [smem:[#allocation2]] %s6
  $region1: #{tpu_custom_call.1} parent=0
    #allocation3 [shape = 'u8[8192]{0}', space=vmem, size = 0x2000, scoped, tag = 'input window, operand 0, single buffered']
    #allocation4 [shape = 's32[1]{0}', space=sflag, size = 0x4, scoped, tag = 'scoped memory for tpu_custom_call.1']
    #allocation5 [shape = 's32[1]{0}', space=sflag, size = 0x4, scoped, tag = 'scoped memory for tpu_custom_call.1']
    #allocation6 [shape = 'u8[32768]{0}', space=vmem, size = 0x8000, scoped, tag = 'input window, operand 1, single buffered']
    #allocation7 [shape = 's32[1]{0}', space=sflag, size = 0x4, scoped, tag = 'scoped memory for tpu_custom_call.1']
    #allocation8 [shape = 'u8[262144]{0}', space=vmem, size = 0x40000, scoped, tag = 'input window, operand 3, single buffered']
    #allocation9 [shape = 'u8[512]{0}', space=vmem, size = 0x400, scoped, tag = 'output window, operand 0, single buffered']
    %13 = vsyncpa [#allocation4], 0
    %14 = vsyncpa [#allocation7], 0
    %15 = vsyncpa [#allocation5], 0
    // Predicated region
    $region2: #{tpu_custom_call.1} parent=1 // pred_check
      _
    $region3: #{tpu_custom_call.1} parent=1 // pred_check_branch
      %17 = sbr.rel (0) target = $region5
    $region4: #{tpu_custom_call.1} parent=1 // pred_region
      %s19 = ssub.s32 256, 256
      %20 = vsyncadd [#allocation4], %s19
      %s21 = sshll.u32 [#allocation3], 4
      %s22 = int_to_ptr.vmem [resolvable:$true] %s21
      %27 = dma.hbm_to_vmem [thread:$0]  %s0, 256, %s22, [#allocation4], 128, 128, 8
    $region5: #{tpu_custom_call.1} parent=1 // pred_fallthru
      _
    // Predicated region
    $region6: #{tpu_custom_call.1} parent=1 // pred_check
      _
    $region7: #{tpu_custom_call.1} parent=1 // pred_check_branch
      %29 = sbr.rel (0) target = $region9
    $region8: #{tpu_custom_call.1} parent=1 // pred_region
      %s31 = ssub.s32 1024, 1024
      %32 = vsyncadd [#allocation7], %s31
      %s33 = sshll.u32 [#allocation6], 4
      %s34 = int_to_ptr.vmem [resolvable:$true] %s33
      %39 = dma.hbm_to_vmem [thread:$0]  %s1, 1024, %s34, [#allocation7], 256, 256, 16
    $region9: #{tpu_custom_call.1} parent=1 // pred_fallthru
      _
    // Predicated region
    $region10: #{tpu_custom_call.1} parent=1 // pred_check
      _
    $region11: #{tpu_custom_call.1} parent=1 // pred_check_branch
      %41 = sbr.rel (0) target = $region13
    $region12: #{tpu_custom_call.1} parent=1 // pred_region
      _
    $region13: #{tpu_custom_call.1} parent=1 // pred_fallthru
      _
    // Predicated region
    $region14: #{tpu_custom_call.1} parent=1 // pred_check
      _
    $region15: #{tpu_custom_call.1} parent=1 // pred_check_branch
      %43 = sbr.rel (0) target = $region17
    $region16: #{tpu_custom_call.1} parent=1 // pred_region
      %s45 = ssub.s32 8192, 8192
      %46 = vsyncadd [#allocation7], %s45
      %s47 = sshll.u32 [#allocation8], 4
      %s48 = int_to_ptr.vmem [resolvable:$true] %s47
      %53 = dma.hbm_to_vmem [thread:$0]  %s3, 8192, %s48, [#allocation7], 128, 128, 8
    $region17: #{tpu_custom_call.1} parent=1 // pred_fallthru
      _
    // Predicated region
    $region18: #{tpu_custom_call.1} parent=1 // pred_check
      _
    $region19: #{tpu_custom_call.1} parent=1 // pred_check_branch
      %55 = sbr.rel (0) target = $region21
    $region20: #{tpu_custom_call.1} parent=1 // pred_region
      _
    $region21: #{tpu_custom_call.1} parent=1 // pred_fallthru
      _
    // Predicated region
    $region22: #{tpu_custom_call.1} parent=1 // pred_check
      _
    $region23: #{tpu_custom_call.1} parent=1 // pred_check_branch
      %57 = sbr.rel (0) target = $region25
    $region24: #{tpu_custom_call.1} parent=1 // pred_region
      _
    $region25: #{tpu_custom_call.1} parent=1 // pred_fallthru
      _
    // Predicated region
    $region26: #{tpu_custom_call.1} parent=1 // pred_check
      _
    $region27: #{tpu_custom_call.1} parent=1 // pred_check_branch
      %59 = sbr.rel (0) target = $region29
    $region28: #{tpu_custom_call.1} parent=1 // pred_region
      _
    $region29: #{tpu_custom_call.1} parent=1 // pred_fallthru
      _
    // Predicated region
    $region30: #{tpu_custom_call.1} parent=1 // pred_check
      _
    $region31: #{tpu_custom_call.1} parent=1 // pred_check_branch
      %61 = sbr.rel (0) target = $region33
    $region32: #{tpu_custom_call.1} parent=1 // pred_region
      %62 = dma.done [#allocation4], 256
    $region33: #{tpu_custom_call.1} parent=1 // pred_fallthru
      _
    // Predicated region
    $region34: #{tpu_custom_call.1} parent=1 // pred_check
      _
    $region35: #{tpu_custom_call.1} parent=1 // pred_check_branch
      %64 = sbr.rel (0) target = $region37
    $region36: #{tpu_custom_call.1} parent=1 // pred_region
      %65 = dma.done [#allocation7], 1024
    $region37: #{tpu_custom_call.1} parent=1 // pred_fallthru
      _
    // Predicated region
    $region38: #{tpu_custom_call.1} parent=1 // pred_check
      _
    $region39: #{tpu_custom_call.1} parent=1 // pred_check_branch
      %67 = sbr.rel (0) target = $region41
    $region40: #{tpu_custom_call.1} parent=1 // pred_region
      %68 = dma.done [#allocation7], 8192
    $region41: #{tpu_custom_call.1} parent=1 // pred_fallthru
      _
    %v71 = vld [vmem:[#allocation3] sm:$0xff]
    %v72 = vld [vmem:[#allocation3 + $0x8] sm:$0xff]
    %v73 = vpack.c.bf16 %v72, %v71
    %v74 = vld [vmem:[#allocation6] sm:$0xff]
    %v75 = vld [vmem:[#allocation6 + $0x8] sm:$0xff]
    %v76 = vld [vmem:[#allocation6 + $0x10] sm:$0xff]
    %v77 = vld [vmem:[#allocation6 + $0x18] sm:$0xff]
    %v78 = vld [vmem:[#allocation6 + $0x20] sm:$0xff]
    %v79 = vld [vmem:[#allocation6 + $0x28] sm:$0xff]
    %v80 = vld [vmem:[#allocation6 + $0x30] sm:$0xff]
    %v81 = vld [vmem:[#allocation6 + $0x38] sm:$0xff]
    %v90 = vunpack.c.l.b16 %v74
    %v91 = vunpack.c.h.b16 %v74
    %v92 = vunpack.c.l.b16 %v75
    %v93 = vunpack.c.h.b16 %v75
    %v94 = vunpack.c.l.b16 %v76
    %v95 = vunpack.c.h.b16 %v76
    %v96 = vunpack.c.l.b16 %v77
    %v97 = vunpack.c.h.b16 %v77
    %v98 = vunpack.c.l.b16 %v78
    %v99 = vunpack.c.h.b16 %v78
    %v100 = vunpack.c.l.b16 %v79
    %v101 = vunpack.c.h.b16 %v79
    %v102 = vunpack.c.l.b16 %v80
    %v103 = vunpack.c.h.b16 %v80
    %v104 = vunpack.c.l.b16 %v81
    %v105 = vunpack.c.h.b16 %v81
    %v106 = vpack.c.b16 %v94, %v90
    %v107 = vpack.c.b16 %v95, %v91
    %v108 = vpack.c.b16 %v96, %v92
    %v109 = vpack.c.b16 %v97, %v93
    %v110 = vpack.c.b16 %v102, %v98
    %v111 = vpack.c.b16 %v103, %v99
    %v112 = vpack.c.b16 %v104, %v100
    %v113 = vpack.c.b16 %v105, %v101
    %vm122 = vcmask 261120
    %v124 = vsel %vm122, %v73, 0
    %126 = vmatprep.subr.bf16.mxu0 0
    %127 = vmatpush1.bf16.msra.mxu0 0
    %128 = vmatprep.subr.bf16.mxu0 0
    %129 = vmatpush1.bf16.msra.mxu0 0
    %130 = vmatprep.subr.bf16.mxu0 0
    %131 = vmatpush1.bf16.msra.mxu0 0
    %132 = vmatprep.subr.bf16.mxu0 0
    %133 = vmatpush1.bf16.msra.mxu0 0
    %134 = vmatprep.subr.bf16.mxu0 0
    %135 = vmatpush1.bf16.msra.mxu0 0
    %136 = vmatprep.subr.bf16.mxu0 0
    %137 = vmatpush1.bf16.msra.mxu0 0
    %138 = vmatprep.subr.bf16.mxu0 %v111
    %139 = vmatpush1.bf16.msra.mxu0 %v110
    %140 = vmatprep.subr.bf16.mxu0 %v107
    %141 = vmatpush1.bf16.msra.mxu0 %v106
    %142 = vmatprep.subr.bf16.mxu0 0
    %143 = vmatpush2.bf16.msra.mxu0 0
    %144 = vmatprep.subr.bf16.mxu0 0
    %145 = vmatpush2.bf16.msra.mxu0 0
    %146 = vmatprep.subr.bf16.mxu0 0
    %147 = vmatpush2.bf16.msra.mxu0 0
    %148 = vmatprep.subr.bf16.mxu0 0
    %149 = vmatpush2.bf16.msra.mxu0 0
    %150 = vmatprep.subr.bf16.mxu0 0
    %151 = vmatpush2.bf16.msra.mxu0 0
    %152 = vmatprep.subr.bf16.mxu0 0
    %153 = vmatpush2.bf16.msra.mxu0 0
    %154 = vmatprep.subr.bf16.mxu0 0
    %155 = vmatpush2.bf16.msra.mxu0 0
    %156 = vmatprep.subr.bf16.mxu0 0
    %157 = vmatpush2.bf16.msra.mxu0 0
    %158 = vmatprep.mubr.bf16.mxu0 0
    %159 = vmatmul.mubr.bf16.gmra.mxu0 %v124
    %v160 = vpop.f32.mrf.mxu0
    %v161 = vadd.f32 0.0, %v160
    %v162 = vpop.f32.mrf.mxu0
    %v163 = vadd.f32 0.0, %v162
    %v164 = vpop.f32.mrf.mxu0
    %v165 = vadd.f32 0.0, %v164
    %v166 = vpop.f32.mrf.mxu0
    %v167 = vadd.f32 0.0, %v166
    %168 = vdwg.mxu0
    %169 = vmatprep.subr.bf16.mxu0 0
    %170 = vmatpush1.bf16.msra.mxu0 0
    %171 = vmatprep.subr.bf16.mxu0 0
    %172 = vmatpush1.bf16.msra.mxu0 0
    %173 = vmatprep.subr.bf16.mxu0 0
    %174 = vmatpush1.bf16.msra.mxu0 0
    %175 = vmatprep.subr.bf16.mxu0 0
    %176 = vmatpush1.bf16.msra.mxu0 0
    %177 = vmatprep.subr.bf16.mxu0 0
    %178 = vmatpush1.bf16.msra.mxu0 0
    %179 = vmatprep.subr.bf16.mxu0 0
    %180 = vmatpush1.bf16.msra.mxu0 0
    %181 = vmatprep.subr.bf16.mxu0 %v113
    %182 = vmatpush1.bf16.msra.mxu0 %v112
    %183 = vmatprep.subr.bf16.mxu0 %v109
    %184 = vmatpush1.bf16.msra.mxu0 %v108
    %185 = vmatprep.subr.bf16.mxu0 0
    %186 = vmatpush2.bf16.msra.mxu0 0
    %187 = vmatprep.subr.bf16.mxu0 0
    %188 = vmatpush2.bf16.msra.mxu0 0
    %189 = vmatprep.subr.bf16.mxu0 0
    %190 = vmatpush2.bf16.msra.mxu0 0
    %191 = vmatprep.subr.bf16.mxu0 0
    %192 = vmatpush2.bf16.msra.mxu0 0
    %193 = vmatprep.subr.bf16.mxu0 0
    %194 = vmatpush2.bf16.msra.mxu0 0
    %195 = vmatprep.subr.bf16.mxu0 0
    %196 = vmatpush2.bf16.msra.mxu0 0
    %197 = vmatprep.subr.bf16.mxu0 0
    %198 = vmatpush2.bf16.msra.mxu0 0
    %199 = vmatprep.subr.bf16.mxu0 0
    %200 = vmatpush2.bf16.msra.mxu0 0
    %201 = vmatprep.mubr.bf16.mxu0 0
    %202 = vmatmul.mubr.bf16.gmra.mxu0 %v124
    %v203 = vpop.f32.mrf.mxu0
    %v204 = vadd.f32 0.0, %v203
    %v205 = vpop.f32.mrf.mxu0
    %v206 = vadd.f32 0.0, %v205
    %v207 = vpop.f32.mrf.mxu0
    %v208 = vadd.f32 0.0, %v207
    %v209 = vpop.f32.mrf.mxu0
    %v210 = vadd.f32 0.0, %v209
    %211 = vdwg.mxu0
    %v212 = vpack.c.bf16 %v165, %v161
    %v213 = vpack.c.bf16 %v167, %v163
    %v214 = vpack.c.bf16 %v208, %v204
    %v215 = vpack.c.bf16 %v210, %v206
    %v216 = vld [vmem:[%s2] sm:$0xf]
    %v218 = vlaneseq
    %v219 = vshrl.u32 %v218, 7
    %v220 = vsub.s32 0, %v219
    %v221 = vrot.slane %v216, %v220
    %v222 = vlaneseq
    %v223 = vshrl.u32 %v222, 7
    %v224 = vsub.s32 1, %v223
    %v225 = vrot.slane %v216, %v224
    %v226 = vlaneseq
    %v227 = vshrl.u32 %v226, 7
    %v228 = vsub.s32 2, %v227
    %v229 = vrot.slane %v216, %v228
    %v230 = vlaneseq
    %v231 = vshrl.u32 %v230, 7
    %v232 = vsub.s32 3, %v231
    %v233 = vrot.slane %v216, %v232
    %v238 = vpack.c.bf16 %v221, %v221
    %v239 = vpack.c.bf16 %v225, %v225
    %v240 = vpack.c.bf16 %v229, %v229
    %v241 = vpack.c.bf16 %v233, %v233
    %v243 = vpack.i.b16 %v238, %v238
    %v245 = vlaneseq
    %v246 = vshrl.u32 %v245, 7
    %v247 = vsub.s32 0, %v246
    %v248 = vrot.slane %v243, %v247
    %v250 = vpack.i.b16 %v239, %v239
    %v252 = vlaneseq
    %v253 = vshrl.u32 %v252, 7
    %v254 = vsub.s32 0, %v253
    %v255 = vrot.slane %v250, %v254
    %v257 = vpack.i.b16 %v240, %v240
    %v259 = vlaneseq
    %v260 = vshrl.u32 %v259, 7
    %v261 = vsub.s32 0, %v260
    %v262 = vrot.slane %v257, %v261
    %v264 = vpack.i.b16 %v241, %v241
    %v266 = vlaneseq
    %v267 = vshrl.u32 %v266, 7
    %v268 = vsub.s32 0, %v267
    %v269 = vrot.slane %v264, %v268
    %v270 = vadd.bf16 %v212, %v248
    %v271 = vadd.bf16 %v213, %v255
    %v272 = vadd.bf16 %v214, %v262
    %v273 = vadd.bf16 %v215, %v269
    %v274 = vmul.bf16 %v270, 1045249613
    %v275 = vmul.bf16 %v271, 1045249613
    %v276 = vmul.bf16 %v272, 1045249613
    %v277 = vmul.bf16 %v273, 1045249613
    %v278 = vmax.bf16 %v270, %v274
    %v279 = vmax.bf16 %v271, %v275
    %v280 = vmax.bf16 %v272, %v276
    %v281 = vmax.bf16 %v273, %v277
    %v282 = vld [vmem:[#allocation8] sm:$0xff]
    %v283 = vld [vmem:[#allocation8 + $0x8] sm:$0xff]
    %v284 = vld [vmem:[#allocation8 + $0x10] sm:$0xff]
    %v285 = vld [vmem:[#allocation8 + $0x18] sm:$0xff]
    %v286 = vld [vmem:[#allocation8 + $0x20] sm:$0xff]
    %v287 = vld [vmem:[#allocation8 + $0x28] sm:$0xff]
    %v288 = vld [vmem:[#allocation8 + $0x30] sm:$0xff]
    %v289 = vld [vmem:[#allocation8 + $0x38] sm:$0xff]
    %v290 = vld [vmem:[#allocation8 + $0x40] sm:$0xff]
    %v291 = vld [vmem:[#allocation8 + $0x48] sm:$0xff]
    %v292 = vld [vmem:[#allocation8 + $0x50] sm:$0xff]
    %v293 = vld [vmem:[#allocation8 + $0x58] sm:$0xff]
    %v294 = vld [vmem:[#allocation8 + $0x60] sm:$0xff]
    %v295 = vld [vmem:[#allocation8 + $0x68] sm:$0xff]
    %v296 = vld [vmem:[#allocation8 + $0x70] sm:$0xff]
    %v297 = vld [vmem:[#allocation8 + $0x78] sm:$0xff]
    %v298 = vld [vmem:[#allocation8 + $0x80] sm:$0xff]
    %v299 = vld [vmem:[#allocation8 + $0x88] sm:$0xff]
    %v300 = vld [vmem:[#allocation8 + $0x90] sm:$0xff]
    %v301 = vld [vmem:[#allocation8 + $0x98] sm:$0xff]
    %v302 = vld [vmem:[#allocation8 + $0xa0] sm:$0xff]
    %v303 = vld [vmem:[#allocation8 + $0xa8] sm:$0xff]
    %v304 = vld [vmem:[#allocation8 + $0xb0] sm:$0xff]
    %v305 = vld [vmem:[#allocation8 + $0xb8] sm:$0xff]
    %v306 = vld [vmem:[#allocation8 + $0xc0] sm:$0xff]
    %v307 = vld [vmem:[#allocation8 + $0xc8] sm:$0xff]
    %v308 = vld [vmem:[#allocation8 + $0xd0] sm:$0xff]
    %v309 = vld [vmem:[#allocation8 + $0xd8] sm:$0xff]
    %v310 = vld [vmem:[#allocation8 + $0xe0] sm:$0xff]
    %v311 = vld [vmem:[#allocation8 + $0xe8] sm:$0xff]
    %v312 = vld [vmem:[#allocation8 + $0xf0] sm:$0xff]
    %v313 = vld [vmem:[#allocation8 + $0xf8] sm:$0xff]
    %v314 = vld [vmem:[#allocation8 + $0x100] sm:$0xff]
    %v315 = vld [vmem:[#allocation8 + $0x108] sm:$0xff]
    %v316 = vld [vmem:[#allocation8 + $0x110] sm:$0xff]
    %v317 = vld [vmem:[#allocation8 + $0x118] sm:$0xff]
    %v318 = vld [vmem:[#allocation8 + $0x120] sm:$0xff]
    %v319 = vld [vmem:[#allocation8 + $0x128] sm:$0xff]
    %v320 = vld [vmem:[#allocation8 + $0x130] sm:$0xff]
    %v321 = vld [vmem:[#allocation8 + $0x138] sm:$0xff]
    %v322 = vld [vmem:[#allocation8 + $0x140] sm:$0xff]
    %v323 = vld [vmem:[#allocation8 + $0x148] sm:$0xff]
    %v324 = vld [vmem:[#allocation8 + $0x150] sm:$0xff]
    %v325 = vld [vmem:[#allocation8 + $0x158] sm:$0xff]
    %v326 = vld [vmem:[#allocation8 + $0x160] sm:$0xff]
    %v327 = vld [vmem:[#allocation8 + $0x168] sm:$0xff]
    %v328 = vld [vmem:[#allocation8 + $0x170] sm:$0xff]
    %v329 = vld [vmem:[#allocation8 + $0x178] sm:$0xff]
    %v330 = vld [vmem:[#allocation8 + $0x180] sm:$0xff]
    %v331 = vld [vmem:[#allocation8 + $0x188] sm:$0xff]
    %v332 = vld [vmem:[#allocation8 + $0x190] sm:$0xff]
    %v333 = vld [vmem:[#allocation8 + $0x198] sm:$0xff]
    %v334 = vld [vmem:[#allocation8 + $0x1a0] sm:$0xff]
    %v335 = vld [vmem:[#allocation8 + $0x1a8] sm:$0xff]
    %v336 = vld [vmem:[#allocation8 + $0x1b0] sm:$0xff]
    %v337 = vld [vmem:[#allocation8 + $0x1b8] sm:$0xff]
    %v338 = vld [vmem:[#allocation8 + $0x1c0] sm:$0xff]
    %v339 = vld [vmem:[#allocation8 + $0x1c8] sm:$0xff]
    %v340 = vld [vmem:[#allocation8 + $0x1d0] sm:$0xff]
    %v341 = vld [vmem:[#allocation8 + $0x1d8] sm:$0xff]
    %v342 = vld [vmem:[#allocation8 + $0x1e0] sm:$0xff]
    %v343 = vld [vmem:[#allocation8 + $0x1e8] sm:$0xff]
    %v344 = vld [vmem:[#allocation8 + $0x1f0] sm:$0xff]
    %v345 = vld [vmem:[#allocation8 + $0x1f8] sm:$0xff]
    %v410 = vunpack.c.l.b16 %v282
    %v411 = vunpack.c.h.b16 %v282
    %v412 = vunpack.c.l.b16 %v283
    %v413 = vunpack.c.h.b16 %v283
    %v414 = vunpack.c.l.b16 %v284
    %v415 = vunpack.c.h.b16 %v284
    %v416 = vunpack.c.l.b16 %v285
    %v417 = vunpack.c.h.b16 %v285
    %v418 = vunpack.c.l.b16 %v286
    %v419 = vunpack.c.h.b16 %v286
    %v420 = vunpack.c.l.b16 %v287
    %v421 = vunpack.c.h.b16 %v287
    %v422 = vunpack.c.l.b16 %v288
    %v423 = vunpack.c.h.b16 %v288
    %v424 = vunpack.c.l.b16 %v289
    %v425 = vunpack.c.h.b16 %v289
    %v426 = vunpack.c.l.b16 %v290
    %v427 = vunpack.c.h.b16 %v290
    %v428 = vunpack.c.l.b16 %v291
    %v429 = vunpack.c.h.b16 %v291
    %v430 = vunpack.c.l.b16 %v292
    %v431 = vunpack.c.h.b16 %v292
    %v432 = vunpack.c.l.b16 %v293
    %v433 = vunpack.c.h.b16 %v293
    %v434 = vunpack.c.l.b16 %v294
    %v435 = vunpack.c.h.b16 %v294
    %v436 = vunpack.c.l.b16 %v295
    %v437 = vunpack.c.h.b16 %v295
    %v438 = vunpack.c.l.b16 %v296
    %v439 = vunpack.c.h.b16 %v296
    %v440 = vunpack.c.l.b16 %v297
    %v441 = vunpack.c.h.b16 %v297
    %v442 = vunpack.c.l.b16 %v298
    %v443 = vunpack.c.h.b16 %v298
    %v444 = vunpack.c.l.b16 %v299
    %v445 = vunpack.c.h.b16 %v299
    %v446 = vunpack.c.l.b16 %v300
    %v447 = vunpack.c.h.b16 %v300
    %v448 = vunpack.c.l.b16 %v301
    %v449 = vunpack.c.h.b16 %v301
    %v450 = vunpack.c.l.b16 %v302
    %v451 = vunpack.c.h.b16 %v302
    %v452 = vunpack.c.l.b16 %v303
    %v453 = vunpack.c.h.b16 %v303
    %v454 = vunpack.c.l.b16 %v304
    %v455 = vunpack.c.h.b16 %v304
    %v456 = vunpack.c.l.b16 %v305
    %v457 = vunpack.c.h.b16 %v305
    %v458 = vunpack.c.l.b16 %v306
    %v459 = vunpack.c.h.b16 %v306
    %v460 = vunpack.c.l.b16 %v307
    %v461 = vunpack.c.h.b16 %v307
    %v462 = vunpack.c.l.b16 %v308
    %v463 = vunpack.c.h.b16 %v308
    %v464 = vunpack.c.l.b16 %v309
    %v465 = vunpack.c.h.b16 %v309
    %v466 = vunpack.c.l.b16 %v310
    %v467 = vunpack.c.h.b16 %v310
    %v468 = vunpack.c.l.b16 %v311
    %v469 = vunpack.c.h.b16 %v311
    %v470 = vunpack.c.l.b16 %v312
    %v471 = vunpack.c.h.b16 %v312
    %v472 = vunpack.c.l.b16 %v313
    %v473 = vunpack.c.h.b16 %v313
    %v474 = vunpack.c.l.b16 %v314
    %v475 = vunpack.c.h.b16 %v314
    %v476 = vunpack.c.l.b16 %v315
    %v477 = vunpack.c.h.b16 %v315
    %v478 = vunpack.c.l.b16 %v316
    %v479 = vunpack.c.h.b16 %v316
    %v480 = vunpack.c.l.b16 %v317
    %v481 = vunpack.c.h.b16 %v317
    %v482 = vunpack.c.l.b16 %v318
    %v483 = vunpack.c.h.b16 %v318
    %v484 = vunpack.c.l.b16 %v319
    %v485 = vunpack.c.h.b16 %v319
    %v486 = vunpack.c.l.b16 %v320
    %v487 = vunpack.c.h.b16 %v320
    %v488 = vunpack.c.l.b16 %v321
    %v489 = vunpack.c.h.b16 %v321
    %v490 = vunpack.c.l.b16 %v322
    %v491 = vunpack.c.h.b16 %v322
    %v492 = vunpack.c.l.b16 %v323
    %v493 = vunpack.c.h.b16 %v323
    %v494 = vunpack.c.l.b16 %v324
    %v495 = vunpack.c.h.b16 %v324
    %v496 = vunpack.c.l.b16 %v325
    %v497 = vunpack.c.h.b16 %v325
    %v498 = vunpack.c.l.b16 %v326
    %v499 = vunpack.c.h.b16 %v326
    %v500 = vunpack.c.l.b16 %v327
    %v501 = vunpack.c.h.b16 %v327
    %v502 = vunpack.c.l.b16 %v328
    %v503 = vunpack.c.h.b16 %v328
    %v504 = vunpack.c.l.b16 %v329
    %v505 = vunpack.c.h.b16 %v329
    %v506 = vunpack.c.l.b16 %v330
    %v507 = vunpack.c.h.b16 %v330
    %v508 = vunpack.c.l.b16 %v331
    %v509 = vunpack.c.h.b16 %v331
    %v510 = vunpack.c.l.b16 %v332
    %v511 = vunpack.c.h.b16 %v332
    %v512 = vunpack.c.l.b16 %v333
    %v513 = vunpack.c.h.b16 %v333
    %v514 = vunpack.c.l.b16 %v334
    %v515 = vunpack.c.h.b16 %v334
    %v516 = vunpack.c.l.b16 %v335
    %v517 = vunpack.c.h.b16 %v335
    %v518 = vunpack.c.l.b16 %v336
    %v519 = vunpack.c.h.b16 %v336
    %v520 = vunpack.c.l.b16 %v337
    %v521 = vunpack.c.h.b16 %v337
    %v522 = vunpack.c.l.b16 %v338
    %v523 = vunpack.c.h.b16 %v338
    %v524 = vunpack.c.l.b16 %v339
    %v525 = vunpack.c.h.b16 %v339
    %v526 = vunpack.c.l.b16 %v340
    %v527 = vunpack.c.h.b16 %v340
    %v528 = vunpack.c.l.b16 %v341
    %v529 = vunpack.c.h.b16 %v341
    %v530 = vunpack.c.l.b16 %v342
    %v531 = vunpack.c.h.b16 %v342
    %v532 = vunpack.c.l.b16 %v343
    %v533 = vunpack.c.h.b16 %v343
    %v534 = vunpack.c.l.b16 %v344
    %v535 = vunpack.c.h.b16 %v344
    %v536 = vunpack.c.l.b16 %v345
    %v537 = vunpack.c.h.b16 %v345
    %v538 = vpack.c.b16 %v412, %v410
    %v539 = vpack.c.b16 %v413, %v411
    %v540 = vpack.c.b16 %v416, %v414
    %v541 = vpack.c.b16 %v417, %v415
    %v542 = vpack.c.b16 %v420, %v418
    %v543 = vpack.c.b16 %v421, %v419
    %v544 = vpack.c.b16 %v424, %v422
    %v545 = vpack.c.b16 %v425, %v423
    %v546 = vpack.c.b16 %v428, %v426
    %v547 = vpack.c.b16 %v429, %v427
    %v548 = vpack.c.b16 %v432, %v430
    %v549 = vpack.c.b16 %v433, %v431
    %v550 = vpack.c.b16 %v436, %v434
    %v551 = vpack.c.b16 %v437, %v435
    %v552 = vpack.c.b16 %v440, %v438
    %v553 = vpack.c.b16 %v441, %v439
    %v554 = vpack.c.b16 %v444, %v442
    %v555 = vpack.c.b16 %v445, %v443
    %v556 = vpack.c.b16 %v448, %v446
    %v557 = vpack.c.b16 %v449, %v447
    %v558 = vpack.c.b16 %v452, %v450
    %v559 = vpack.c.b16 %v453, %v451
    %v560 = vpack.c.b16 %v456, %v454
    %v561 = vpack.c.b16 %v457, %v455
    %v562 = vpack.c.b16 %v460, %v458
    %v563 = vpack.c.b16 %v461, %v459
    %v564 = vpack.c.b16 %v464, %v462
    %v565 = vpack.c.b16 %v465, %v463
    %v566 = vpack.c.b16 %v468, %v466
    %v567 = vpack.c.b16 %v469, %v467
    %v568 = vpack.c.b16 %v472, %v470
    %v569 = vpack.c.b16 %v473, %v471
    %v570 = vpack.c.b16 %v476, %v474
    %v571 = vpack.c.b16 %v477, %v475
    %v572 = vpack.c.b16 %v480, %v478
    %v573 = vpack.c.b16 %v481, %v479
    %v574 = vpack.c.b16 %v484, %v482
    %v575 = vpack.c.b16 %v485, %v483
    %v576 = vpack.c.b16 %v488, %v486
    %v577 = vpack.c.b16 %v489, %v487
    %v578 = vpack.c.b16 %v492, %v490
    %v579 = vpack.c.b16 %v493, %v491
    %v580 = vpack.c.b16 %v496, %v494
    %v581 = vpack.c.b16 %v497, %v495
    %v582 = vpack.c.b16 %v500, %v498
    %v583 = vpack.c.b16 %v501, %v499
    %v584 = vpack.c.b16 %v504, %v502
    %v585 = vpack.c.b16 %v505, %v503
    %v586 = vpack.c.b16 %v508, %v506
    %v587 = vpack.c.b16 %v509, %v507
    %v588 = vpack.c.b16 %v512, %v510
    %v589 = vpack.c.b16 %v513, %v511
    %v590 = vpack.c.b16 %v516, %v514
    %v591 = vpack.c.b16 %v517, %v515
    %v592 = vpack.c.b16 %v520, %v518
    %v593 = vpack.c.b16 %v521, %v519
    %v594 = vpack.c.b16 %v524, %v522
    %v595 = vpack.c.b16 %v525, %v523
    %v596 = vpack.c.b16 %v528, %v526
    %v597 = vpack.c.b16 %v529, %v527
    %v598 = vpack.c.b16 %v532, %v530
    %v599 = vpack.c.b16 %v533, %v531
    %v600 = vpack.c.b16 %v536, %v534
    %v601 = vpack.c.b16 %v537, %v535
    %666 = vmatprep.subr.bf16.mxu0 %v553
    %667 = vmatpush1.bf16.msra.mxu0 %v552
    %668 = vmatprep.subr.bf16.mxu0 %v551
    %669 = vmatpush1.bf16.msra.mxu0 %v550
    %670 = vmatprep.subr.bf16.mxu0 %v549
    %671 = vmatpush1.bf16.msra.mxu0 %v548
    %672 = vmatprep.subr.bf16.mxu0 %v547
    %673 = vmatpush1.bf16.msra.mxu0 %v546
    %674 = vmatprep.subr.bf16.mxu0 %v545
    %675 = vmatpush1.bf16.msra.mxu0 %v544
    %676 = vmatprep.subr.bf16.mxu0 %v543
    %677 = vmatpush1.bf16.msra.mxu0 %v542
    %678 = vmatprep.subr.bf16.mxu0 %v541
    %679 = vmatpush1.bf16.msra.mxu0 %v540
    %680 = vmatprep.subr.bf16.mxu0 %v539
    %681 = vmatpush1.bf16.msra.mxu0 %v538
    %682 = vmatprep.subr.bf16.mxu0 %v569
    %683 = vmatpush2.bf16.msra.mxu0 %v568
    %684 = vmatprep.subr.bf16.mxu0 %v567
    %685 = vmatpush2.bf16.msra.mxu0 %v566
    %686 = vmatprep.subr.bf16.mxu0 %v565
    %687 = vmatpush2.bf16.msra.mxu0 %v564
    %688 = vmatprep.subr.bf16.mxu0 %v563
    %689 = vmatpush2.bf16.msra.mxu0 %v562
    %690 = vmatprep.subr.bf16.mxu0 %v561
    %691 = vmatpush2.bf16.msra.mxu0 %v560
    %692 = vmatprep.subr.bf16.mxu0 %v559
    %693 = vmatpush2.bf16.msra.mxu0 %v558
    %694 = vmatprep.subr.bf16.mxu0 %v557
    %695 = vmatpush2.bf16.msra.mxu0 %v556
    %696 = vmatprep.subr.bf16.mxu0 %v555
    %697 = vmatpush2.bf16.msra.mxu0 %v554
    %698 = vmatprep.mubr.bf16.mxu0 %v279
    %699 = vmatmul.mubr.bf16.gmra.mxu0 %v278
    %v700 = vpop.f32.mrf.mxu0
    %v701 = vadd.f32 0.0, %v700
    %v702 = vpop.f32.mrf.mxu0
    %v703 = vadd.f32 0.0, %v702
    %v704 = vpop.f32.mrf.mxu0
    %v705 = vadd.f32 0.0, %v704
    %v706 = vpop.f32.mrf.mxu0
    %v707 = vadd.f32 0.0, %v706
    %708 = vdwg.mxu0
    %709 = vmatprep.subr.bf16.mxu0 %v585
    %710 = vmatpush1.bf16.msra.mxu0 %v584
    %711 = vmatprep.subr.bf16.mxu0 %v583
    %712 = vmatpush1.bf16.msra.mxu0 %v582
    %713 = vmatprep.subr.bf16.mxu0 %v581
    %714 = vmatpush1.bf16.msra.mxu0 %v580
    %715 = vmatprep.subr.bf16.mxu0 %v579
    %716 = vmatpush1.bf16.msra.mxu0 %v578
    %717 = vmatprep.subr.bf16.mxu0 %v577
    %718 = vmatpush1.bf16.msra.mxu0 %v576
    %719 = vmatprep.subr.bf16.mxu0 %v575
    %720 = vmatpush1.bf16.msra.mxu0 %v574
    %721 = vmatprep.subr.bf16.mxu0 %v573
    %722 = vmatpush1.bf16.msra.mxu0 %v572
    %723 = vmatprep.subr.bf16.mxu0 %v571
    %724 = vmatpush1.bf16.msra.mxu0 %v570
    %725 = vmatprep.subr.bf16.mxu0 %v601
    %726 = vmatpush2.bf16.msra.mxu0 %v600
    %727 = vmatprep.subr.bf16.mxu0 %v599
    %728 = vmatpush2.bf16.msra.mxu0 %v598
    %729 = vmatprep.subr.bf16.mxu0 %v597
    %730 = vmatpush2.bf16.msra.mxu0 %v596
    %731 = vmatprep.subr.bf16.mxu0 %v595
    %732 = vmatpush2.bf16.msra.mxu0 %v594
    %733 = vmatprep.subr.bf16.mxu0 %v593
    %734 = vmatpush2.bf16.msra.mxu0 %v592
    %735 = vmatprep.subr.bf16.mxu0 %v591
    %736 = vmatpush2.bf16.msra.mxu0 %v590
    %737 = vmatprep.subr.bf16.mxu0 %v589
    %738 = vmatpush2.bf16.msra.mxu0 %v588
    %739 = vmatprep.subr.bf16.mxu0 %v587
    %740 = vmatpush2.bf16.msra.mxu0 %v586
    %741 = vmatprep.mubr.bf16.mxu0 %v281
    %742 = vmatmul.mubr.bf16.gmra.mxu0 %v280
    %v743 = vpop.f32.mrf.mxu0
    %v744 = vadd.f32 %v701, %v743
    %v745 = vpop.f32.mrf.mxu0
    %v746 = vadd.f32 %v703, %v745
    %v747 = vpop.f32.mrf.mxu0
    %v748 = vadd.f32 %v705, %v747
    %v749 = vpop.f32.mrf.mxu0
    %v750 = vadd.f32 %v707, %v749
    %751 = vdwg.mxu0
    %v752 = vpack.c.bf16 %v748, %v744
    %v753 = vpack.c.bf16 %v750, %v746
    %v754 = vld [vmem:[%s4] sm:$0x3]
    %v756 = vlaneseq
    %v757 = vshrl.u32 %v756, 7
    %v758 = vsub.s32 0, %v757
    %v759 = vrot.slane %v754, %v758
    %v760 = vlaneseq
    %v761 = vshrl.u32 %v760, 7
    %v762 = vsub.s32 1, %v761
    %v763 = vrot.slane %v754, %v762
    %v766 = vpack.c.bf16 %v759, %v759
    %v767 = vpack.c.bf16 %v763, %v763
    %v769 = vpack.i.b16 %v766, %v766
    %v771 = vlaneseq
    %v772 = vshrl.u32 %v771, 7
    %v773 = vsub.s32 0, %v772
    %v774 = vrot.slane %v769, %v773
    %v776 = vpack.i.b16 %v767, %v767
    %v778 = vlaneseq
    %v779 = vshrl.u32 %v778, 7
    %v780 = vsub.s32 0, %v779
    %v781 = vrot.slane %v776, %v780
    %v782 = vadd.bf16 %v752, %v774
    %v783 = vadd.bf16 %v753, %v781
    %v784 = vmul.bf16 %v782, 1045249613
    %v785 = vmul.bf16 %v783, 1045249613
    %v786 = vmax.bf16 %v782, %v784
    %v787 = vmax.bf16 %v783, %v785
    %v788 = vunpack.c.l.bf16 %v786
    %v789 = vunpack.c.l.bf16 %v787
    %v790 = vunpack.c.h.bf16 %v786
    %v791 = vunpack.c.h.bf16 %v787
    %v792 = vld [vmem:[%s5] sm:$0x3]
    %v794 = vlaneseq
    %v795 = vshrl.u32 %v794, 7
    %v796 = vsub.s32 0, %v795
    %v797 = vrot.slane %v792, %v796
    %v798 = vlaneseq
    %v799 = vshrl.u32 %v798, 7
    %v800 = vsub.s32 1, %v799
    %v801 = vrot.slane %v792, %v800
    %v804 = vmul.f32 %v788, %v797
    %v805 = vmul.f32 %v789, %v801
    %v806 = vmul.f32 %v790, %v797
    %v807 = vmul.f32 %v791, %v801
    %v808 = vadd.f32 %v804, %v805
    %809 = vadd.xlane.f32.xlu0 %v808
    %v810 = vpop.xlane.xlu0 %809
    %v811 = vadd.f32 %v806, %v807
    %812 = vadd.xlane.f32.xlu0 %v811
    %v813 = vpop.xlane.xlu0 %812
    %s814 = sld [smem:[#allocation2]]
    %v815 = vstv %s814
    %v816 = vadd.f32 %v810, %v815
    %v817 = vadd.f32 %v813, %v815
    %v820 = vlaneseq
    %v821 = vand.u32 %v820, 127
    %v822 = vlaneseq
    %v823 = vshrl.u32 %v822, 7
    %v824 = vsub.s32 %v821, %v823
    %v825 = vrot.slane %v816, %v824
    %v826 = vadd.s32 %v821, 4294967288
    %v827 = vlaneseq
    %v828 = vshrl.u32 %v827, 7
    %v829 = vsub.s32 %v826, %v828
    %v830 = vrot.slane %v817, %v829
    %vm831 = vcmask 130112
    %v832 = vsel %vm831, %v830, %v825
    %vm834 = vcmask 122880
    %835 = vst.msk [vmem:[#allocation9] sm:$0x1] %vm834, %v832
    // Predicated region
    $region42: #{tpu_custom_call.1} parent=1 // pred_check
      _
    $region43: #{tpu_custom_call.1} parent=1 // pred_check_branch
      %837 = sbr.rel (0) target = $region45
    $region44: #{tpu_custom_call.1} parent=1 // pred_region
      %s839 = ssub.s32 16, 16
      %840 = vsyncadd [#allocation5], %s839
      %s842 = sshll.u32 [#allocation9], 4
      %s843 = int_to_ptr.vmem [resolvable:$true] %s842
      %845 = dma.vmem_to_hbm [thread:$0]  %s843, 16, %s7, [#allocation5]
    $region45: #{tpu_custom_call.1} parent=1 // pred_fallthru
      _
    // Predicated region
    $region46: #{tpu_custom_call.1} parent=1 // pred_check
      _
    $region47: #{tpu_custom_call.1} parent=1 // pred_check_branch
      %847 = sbr.rel (0) target = $region49
    $region48: #{tpu_custom_call.1} parent=1 // pred_region
      %848 = dma.done [#allocation5], 16
    $region49: #{tpu_custom_call.1} parent=1 // pred_fallthru
      _
    %849 = vsyncpa [#allocation4], 1
    %850 = vsyncpa [#allocation7], 1
    %851 = vsyncpa [#allocation5], 1

</llo_original>
